<compile_context>
chip_gen: v7x
topology: tpu7x:2x2x1
jax: 0.10.0
libtpu: 0.0.40
codegen_flags: <defaults>
</compile_context>

<pallas_src>
import jax
import jax.numpy as jnp
from jax.experimental import pallas as pl
from jax.experimental.pallas import tpu as pltpu


def _round_up(x, m):
    return (x + m - 1) // m * m


def lstm_kernel(x_ref, wih_ref, whh_ref, b_ref, wl_ref, bl_ref, out_ref):
    """Whole LSTM forward + final Linear in one invocation (input_size == 1).

    x_ref   : (T,)        f32  SMEM  -- per-step scalar inputs
    wih_ref : (1, 4*Hp)   f32  VMEM  -- W_ih row, gate-packed [i|f|g|o], padded
    whh_ref : (Hp, 4*Hp)  bf16 VMEM  -- W_hh^T, gate-packed, lane/row padded
    b_ref   : (1, 4*Hp)   f32  VMEM  -- b_ih + b_hh, gate-packed, padded
    wl_ref  : (1, Hp)     f32  VMEM  -- final Linear row (output_size == 1)
    bl_ref  : (1, 1)      f32  VMEM
    out_ref : (1, 1)      f32  VMEM
    """
    T = x_ref.shape[0]
    Hp = whh_ref.shape[0]

    # Loop-invariant small operands hoisted into vregs (a handful of vregs).
    wih = wih_ref[...]      # (1, 4Hp) f32
    bias = b_ref[...]       # (1, 4Hp) f32

    def step(t, carry):
        h, c = carry
        # Input contribution: SMEM scalar read + VPU splat-FMA.  Independent of
        # h, so it hides under the MXU latency of the recurrent dot.
        x_t = x_ref[t]
        gates_in = x_t * wih + bias                                   # (1, 4Hp)
        # Recurrent contribution: bf16 x bf16 MXU matmul, f32 accumulate.
        gates = gates_in + jnp.dot(h.astype(jnp.bfloat16), whh_ref[...],
                                   preferred_element_type=jnp.float32)
        # EUP: sigmoid only where needed (i|f contiguous, o), tanh on g.
        s_if = jax.nn.sigmoid(gates[:, 0:2 * Hp])
        i = s_if[:, 0:Hp]
        f = s_if[:, Hp:2 * Hp]
        g = jnp.tanh(gates[:, 2 * Hp:3 * Hp])
        o = jax.nn.sigmoid(gates[:, 3 * Hp:4 * Hp])
        c_new = f * c + i * g
        h_new = o * jnp.tanh(c_new)
        return (h_new, c_new)

    h0 = jnp.zeros((1, Hp), jnp.float32)
    c0 = jnp.zeros((1, Hp), jnp.float32)
    # Full unroll only for tiny T; bounded unroll keeps the instruction stream
    # and compile time sane for long sequences.
    h_T, _ = jax.lax.fori_loop(0, T, step, (h0, c0),
                               unroll=(T if T <= 64 else 8))

    # Final Linear (output_size == 1): VPU multiply + lane reduction.
    # TODO(synk): generalize to output_size > 1 with a lane-padded (Hp, out)
    # MXU dot if the module is configured that way.
    out_ref[...] = (jnp.sum(h_T * wl_ref[...], axis=-1, keepdims=True)
                    + bl_ref[...])


@jax.jit
def lstm_forward(x_seq, w_ih, w_hh, b_ih, b_hh, w_lin, b_lin):
    """PyTorch-shaped parameters; returns predictions[-1], shape (output_size,).

    w_ih: (4H, input_size)   w_hh: (4H, H)   b_ih, b_hh: (4H,)
    w_lin: (output_size, H)  b_lin: (output_size,)
    """
    T = x_seq.shape[0]
    H = w_hh.shape[1]
    input_size = w_ih.shape[1]
    out_size = w_lin.shape[0]
    assert out_size == 1, "kernel specializes the final Linear to output_size=1"
    # TODO(synk): input_size > 1 path (precompute x @ W_ih^T with K padded to
    # the MXU-friendly multiple) -- the reference module uses input_size=1.
    assert input_size == 1, "kernel specializes to input_size=1"
    Hp = _round_up(H, 128)

    def pack_gates(w):  # (rows, 4H) -> (rows, 4*Hp): lane-pad each gate block
        r = w.shape[0]
        return jnp.pad(w.reshape(r, 4, H),
                       ((0, 0), (0, 0), (0, Hp - H))).reshape(r, 4 * Hp)

    wih_p = pack_gates(w_ih.T.astype(jnp.float32))                    # (1, 4Hp)
    # bf16 recurrent weights: fewer MXU passes per serial step, half the VMEM.
    whh_p = jnp.pad(pack_gates(w_hh.T.astype(jnp.float32)),
                    ((0, Hp - H), (0, 0))).astype(jnp.bfloat16)       # (Hp, 4Hp)
    b_p = pack_gates((b_ih + b_hh).astype(jnp.float32)[None, :])      # (1, 4Hp)
    wl_p = jnp.pad(w_lin.astype(jnp.float32), ((0, 0), (0, Hp - H)))  # (1, Hp)
    bl_p = b_lin.astype(jnp.float32).reshape(1, out_size)             # (1, 1)
    x1 = x_seq.astype(jnp.float32).reshape(T)                         # (T,) SMEM

    pred = pl.pallas_call(
        lstm_kernel,
        out_shape=jax.ShapeDtypeStruct((1, out_size), jnp.float32),
        in_specs=[pl.BlockSpec(memory_space=pltpu.MemorySpace.SMEM),   # x
                  pl.BlockSpec(memory_space=pltpu.MemorySpace.VMEM),   # W_ih
                  pl.BlockSpec(memory_space=pltpu.MemorySpace.VMEM),   # W_hh
                  pl.BlockSpec(memory_space=pltpu.MemorySpace.VMEM),   # bias
                  pl.BlockSpec(memory_space=pltpu.MemorySpace.VMEM),   # W_lin
                  pl.BlockSpec(memory_space=pltpu.MemorySpace.VMEM)],  # b_lin
        out_specs=pl.BlockSpec(memory_space=pltpu.MemorySpace.VMEM),
    )(x1, wih_p, whh_p, b_p, wl_p, bl_p)

    return pred.reshape(out_size)


def reference_lstm(x_seq, w_ih, w_hh, b_ih, b_hh, w_lin, b_lin):
    """Pure-JAX f32 reference mirroring PyTorch nn.LSTM + Linear, predictions[-1]."""
    H = w_hh.shape[1]
    input_size = w_ih.shape[1]
    wih_t = w_ih.T.astype(jnp.float32)
    whh_t = w_hh.T.astype(jnp.float32)
    bias = (b_ih + b_hh).astype(jnp.float32)[None, :]

    def step(carry, x_t):
        h, c = carry
        gates = x_t @ wih_t + h @ whh_t + bias
        i = jax.nn.sigmoid(gates[:, 0 * H:1 * H])
        f = jax.nn.sigmoid(gates[:, 1 * H:2 * H])
        g = jnp.tanh(gates[:, 2 * H:3 * H])
        o = jax.nn.sigmoid(gates[:, 3 * H:4 * H])
        c = f * c + i * g
        h = o * jnp.tanh(c)
        return (h, c), h

    x = x_seq.astype(jnp.float32).reshape(-1, 1, input_size)
    h0 = jnp.zeros((1, H), jnp.float32)
    c0 = jnp.zeros((1, H), jnp.float32)
    (_, _), hs = jax.lax.scan(step, (h0, c0), x)
    preds = (hs.reshape(-1, H) @ w_lin.T.astype(jnp.float32)
             + b_lin.astype(jnp.float32))
    return preds[-1].reshape(-1)


if __name__ == "__main__":
    T = 8               # sequence length
    INPUT_SIZE = 1
    HIDDEN = 32         # hidden_layer_size (small for the example)
    OUT = 1             # output_size

    key = jax.random.PRNGKey(0)
    k = jax.random.split(key, 7)
    bound = 1.0 / jnp.sqrt(HIDDEN)

    # PyTorch-style parameter shapes.
    w_ih = jax.random.uniform(k[0], (4 * HIDDEN, INPUT_SIZE), jnp.float32, -bound, bound)
    w_hh = jax.random.uniform(k[1], (4 * HIDDEN, HIDDEN), jnp.float32, -bound, bound)
    b_ih = jax.random.uniform(k[2], (4 * HIDDEN,), jnp.float32, -bound, bound)
    b_hh = jax.random.uniform(k[3], (4 * HIDDEN,), jnp.float32, -bound, bound)
    w_lin = jax.random.uniform(k[4], (OUT, HIDDEN), jnp.float32, -bound, bound)
    b_lin = jax.random.uniform(k[5], (OUT,), jnp.float32, -bound, bound)
    x_seq = jax.random.normal(k[6], (T,), jnp.float32)

    pred = lstm_forward(x_seq, w_ih, w_hh, b_ih, b_hh, w_lin, b_lin)
    pred = jax.block_until_ready(pred)

    ref = reference_lstm(x_seq, w_ih, w_hh, b_ih, b_hh, w_lin, b_lin)
    assert pred.shape == (OUT,)
    # Tolerance relaxed for the bf16 recurrent matmul (reference is pure f32).
    assert jnp.allclose(pred, ref, atol=5e-2, rtol=5e-2), (pred, ref)

    print("KERNEL_OK")
</pallas_src>

<mosaic_0001>
module attributes {stable_mosaic.version = 11 : i64} {
  func.func @lstm_kernel(%arg0: memref<8xf32, #tpu.memory_space<smem>>, %arg1: memref<1x512xf32, #tpu.memory_space<vmem>>, %arg2: memref<128x512xbf16, #tpu.memory_space<vmem>>, %arg3: memref<1x512xf32, #tpu.memory_space<vmem>>, %arg4: memref<1x128xf32, #tpu.memory_space<vmem>>, %arg5: memref<1x1xf32, #tpu.memory_space<vmem>>, %arg6: memref<1x1xf32, #tpu.memory_space<vmem>>) attributes {dimension_semantics = [], scalar_prefetch = 0 : i64, scratch_operands = 0 : i64, tpu.core_type = #tpu.core_type<tc>} {
    %c0 = arith.constant 0 : index
    %c0_0 = arith.constant 0 : index
    %0 = vector.load %arg1[%c0, %c0_0] : memref<1x512xf32, #tpu.memory_space<vmem>>, vector<1x512xf32>
    %c0_1 = arith.constant 0 : index
    %c0_2 = arith.constant 0 : index
    %1 = vector.load %arg3[%c0_1, %c0_2] : memref<1x512xf32, #tpu.memory_space<vmem>>, vector<1x512xf32>
    %cst = arith.constant 0.000000e+00 : f32
    %2 = vector.broadcast %cst : f32 to vector<1x128xf32>
    %cst_3 = arith.constant 0.000000e+00 : f32
    %3 = vector.broadcast %cst_3 : f32 to vector<1x128xf32>
    %c0_i32 = arith.constant 0 : i32
    %4 = arith.index_cast %c0_i32 : i32 to index
    %5 = memref.load %arg0[%4] : memref<8xf32, #tpu.memory_space<smem>>
    %6 = vector.broadcast %5 : f32 to vector<1x512xf32>
    %7 = arith.mulf %6, %0 : vector<1x512xf32>
    %8 = arith.addf %7, %1 : vector<1x512xf32>
    %9 = arith.truncf %2 : vector<1x128xf32> to vector<1x128xbf16>
    %c0_4 = arith.constant 0 : index
    %c0_5 = arith.constant 0 : index
    %10 = vector.load %arg2[%c0_4, %c0_5] : memref<128x512xbf16, #tpu.memory_space<vmem>>, vector<128x512xbf16>
    %cst_6 = arith.constant dense<0.000000e+00> : vector<1x512xf32>
    %11 = tpu.matmul %9, %10, %cst_6 {dimension_numbers = #tpu.dot_dimension_numbers<[1], [0], [0], [1], [0, 0, 1, 1], [], []>} : vector<1x128xbf16>, vector<128x512xbf16>, vector<1x512xf32> -> vector<1x512xf32>
    %12 = arith.addf %8, %11 : vector<1x512xf32>
    %13 = vector.extract_strided_slice %12 {offsets = [0, 0], sizes = [1, 256], strides = [1, 1]} : vector<1x512xf32> to vector<1x256xf32>
    %14 = arith.negf %13 : vector<1x256xf32>
    %15 = math.exp %14 : vector<1x256xf32>
    %cst_7 = arith.constant 1.000000e+00 : f32
    %16 = vector.broadcast %cst_7 : f32 to vector<1x256xf32>
    %17 = arith.addf %16, %15 : vector<1x256xf32>
    %18 = arith.divf %16, %17 : vector<1x256xf32>
    %19 = vector.extract_strided_slice %18 {offsets = [0, 0], sizes = [1, 128], strides = [1, 1]} : vector<1x256xf32> to vector<1x128xf32>
    %20 = vector.extract_strided_slice %18 {offsets = [0, 128], sizes = [1, 128], strides = [1, 1]} : vector<1x256xf32> to vector<1x128xf32>
    %21 = vector.extract_strided_slice %12 {offsets = [0, 256], sizes = [1, 128], strides = [1, 1]} : vector<1x512xf32> to vector<1x128xf32>
    %22 = math.tanh %21 : vector<1x128xf32>
    %23 = vector.extract_strided_slice %12 {offsets = [0, 384], sizes = [1, 128], strides = [1, 1]} : vector<1x512xf32> to vector<1x128xf32>
    %24 = arith.negf %23 : vector<1x128xf32>
    %25 = math.exp %24 : vector<1x128xf32>
    %cst_8 = arith.constant 1.000000e+00 : f32
    %26 = vector.broadcast %cst_8 : f32 to vector<1x128xf32>
    %27 = arith.addf %26, %25 : vector<1x128xf32>
    %28 = arith.divf %26, %27 : vector<1x128xf32>
    %29 = arith.mulf %20, %3 : vector<1x128xf32>
    %30 = arith.mulf %19, %22 : vector<1x128xf32>
    %31 = arith.addf %29, %30 : vector<1x128xf32>
    %32 = math.tanh %31 : vector<1x128xf32>
    %33 = arith.mulf %28, %32 : vector<1x128xf32>
    %c1_i32 = arith.constant 1 : i32
    %34 = arith.index_cast %c1_i32 : i32 to index
    %35 = memref.load %arg0[%34] : memref<8xf32, #tpu.memory_space<smem>>
    %36 = vector.broadcast %35 : f32 to vector<1x512xf32>
    %37 = arith.mulf %36, %0 : vector<1x512xf32>
    %38 = arith.addf %37, %1 : vector<1x512xf32>
    %39 = arith.truncf %33 : vector<1x128xf32> to vector<1x128xbf16>
    %c0_9 = arith.constant 0 : index
    %c0_10 = arith.constant 0 : index
    %40 = vector.load %arg2[%c0_9, %c0_10] : memref<128x512xbf16, #tpu.memory_space<vmem>>, vector<128x512xbf16>
    %cst_11 = arith.constant dense<0.000000e+00> : vector<1x512xf32>
    %41 = tpu.matmul %39, %40, %cst_11 {dimension_numbers = #tpu.dot_dimension_numbers<[1], [0], [0], [1], [0, 0, 1, 1], [], []>} : vector<1x128xbf16>, vector<128x512xbf16>, vector<1x512xf32> -> vector<1x512xf32>
    %42 = arith.addf %38, %41 : vector<1x512xf32>
    %43 = vector.extract_strided_slice %42 {offsets = [0, 0], sizes = [1, 256], strides = [1, 1]} : vector<1x512xf32> to vector<1x256xf32>
    %44 = arith.negf %43 : vector<1x256xf32>
    %45 = math.exp %44 : vector<1x256xf32>
    %cst_12 = arith.constant 1.000000e+00 : f32
    %46 = vector.broadcast %cst_12 : f32 to vector<1x256xf32>
    %47 = arith.addf %46, %45 : vector<1x256xf32>
    %48 = arith.divf %46, %47 : vector<1x256xf32>
    %49 = vector.extract_strided_slice %48 {offsets = [0, 0], sizes = [1, 128], strides = [1, 1]} : vector<1x256xf32> to vector<1x128xf32>
    %50 = vector.extract_strided_slice %48 {offsets = [0, 128], sizes = [1, 128], strides = [1, 1]} : vector<1x256xf32> to vector<1x128xf32>
    %51 = vector.extract_strided_slice %42 {offsets = [0, 256], sizes = [1, 128], strides = [1, 1]} : vector<1x512xf32> to vector<1x128xf32>
    %52 = math.tanh %51 : vector<1x128xf32>
    %53 = vector.extract_strided_slice %42 {offsets = [0, 384], sizes = [1, 128], strides = [1, 1]} : vector<1x512xf32> to vector<1x128xf32>
    %54 = arith.negf %53 : vector<1x128xf32>
    %55 = math.exp %54 : vector<1x128xf32>
    %cst_13 = arith.constant 1.000000e+00 : f32
    %56 = vector.broadcast %cst_13 : f32 to vector<1x128xf32>
    %57 = arith.addf %56, %55 : vector<1x128xf32>
    %58 = arith.divf %56, %57 : vector<1x128xf32>
    %59 = arith.mulf %50, %31 : vector<1x128xf32>
    %60 = arith.mulf %49, %52 : vector<1x128xf32>
    %61 = arith.addf %59, %60 : vector<1x128xf32>
    %62 = math.tanh %61 : vector<1x128xf32>
    %63 = arith.mulf %58, %62 : vector<1x128xf32>
    %c2_i32 = arith.constant 2 : i32
    %64 = arith.index_cast %c2_i32 : i32 to index
    %65 = memref.load %arg0[%64] : memref<8xf32, #tpu.memory_space<smem>>
    %66 = vector.broadcast %65 : f32 to vector<1x512xf32>
    %67 = arith.mulf %66, %0 : vector<1x512xf32>
    %68 = arith.addf %67, %1 : vector<1x512xf32>
    %69 = arith.truncf %63 : vector<1x128xf32> to vector<1x128xbf16>
    %c0_14 = arith.constant 0 : index
    %c0_15 = arith.constant 0 : index
    %70 = vector.load %arg2[%c0_14, %c0_15] : memref<128x512xbf16, #tpu.memory_space<vmem>>, vector<128x512xbf16>
    %cst_16 = arith.constant dense<0.000000e+00> : vector<1x512xf32>
    %71 = tpu.matmul %69, %70, %cst_16 {dimension_numbers = #tpu.dot_dimension_numbers<[1], [0], [0], [1], [0, 0, 1, 1], [], []>} : vector<1x128xbf16>, vector<128x512xbf16>, vector<1x512xf32> -> vector<1x512xf32>
    %72 = arith.addf %68, %71 : vector<1x512xf32>
    %73 = vector.extract_strided_slice %72 {offsets = [0, 0], sizes = [1, 256], strides = [1, 1]} : vector<1x512xf32> to vector<1x256xf32>
    %74 = arith.negf %73 : vector<1x256xf32>
    %75 = math.exp %74 : vector<1x256xf32>
    %cst_17 = arith.constant 1.000000e+00 : f32
    %76 = vector.broadcast %cst_17 : f32 to vector<1x256xf32>
    %77 = arith.addf %76, %75 : vector<1x256xf32>
    %78 = arith.divf %76, %77 : vector<1x256xf32>
    %79 = vector.extract_strided_slice %78 {offsets = [0, 0], sizes = [1, 128], strides = [1, 1]} : vector<1x256xf32> to vector<1x128xf32>
    %80 = vector.extract_strided_slice %78 {offsets = [0, 128], sizes = [1, 128], strides = [1, 1]} : vector<1x256xf32> to vector<1x128xf32>
    %81 = vector.extract_strided_slice %72 {offsets = [0, 256], sizes = [1, 128], strides = [1, 1]} : vector<1x512xf32> to vector<1x128xf32>
    %82 = math.tanh %81 : vector<1x128xf32>
    %83 = vector.extract_strided_slice %72 {offsets = [0, 384], sizes = [1, 128], strides = [1, 1]} : vector<1x512xf32> to vector<1x128xf32>
    %84 = arith.negf %83 : vector<1x128xf32>
    %85 = math.exp %84 : vector<1x128xf32>
    %cst_18 = arith.constant 1.000000e+00 : f32
    %86 = vector.broadcast %cst_18 : f32 to vector<1x128xf32>
    %87 = arith.addf %86, %85 : vector<1x128xf32>
    %88 = arith.divf %86, %87 : vector<1x128xf32>
    %89 = arith.mulf %80, %61 : vector<1x128xf32>
    %90 = arith.mulf %79, %82 : vector<1x128xf32>
    %91 = arith.addf %89, %90 : vector<1x128xf32>
    %92 = math.tanh %91 : vector<1x128xf32>
    %93 = arith.mulf %88, %92 : vector<1x128xf32>
    %c3_i32 = arith.constant 3 : i32
    %94 = arith.index_cast %c3_i32 : i32 to index
    %95 = memref.load %arg0[%94] : memref<8xf32, #tpu.memory_space<smem>>
    %96 = vector.broadcast %95 : f32 to vector<1x512xf32>
    %97 = arith.mulf %96, %0 : vector<1x512xf32>
    %98 = arith.addf %97, %1 : vector<1x512xf32>
    %99 = arith.truncf %93 : vector<1x128xf32> to vector<1x128xbf16>
    %c0_19 = arith.constant 0 : index
    %c0_20 = arith.constant 0 : index
    %100 = vector.load %arg2[%c0_19, %c0_20] : memref<128x512xbf16, #tpu.memory_space<vmem>>, vector<128x512xbf16>
    %cst_21 = arith.constant dense<0.000000e+00> : vector<1x512xf32>
    %101 = tpu.matmul %99, %100, %cst_21 {dimension_numbers = #tpu.dot_dimension_numbers<[1], [0], [0], [1], [0, 0, 1, 1], [], []>} : vector<1x128xbf16>, vector<128x512xbf16>, vector<1x512xf32> -> vector<1x512xf32>
    %102 = arith.addf %98, %101 : vector<1x512xf32>
    %103 = vector.extract_strided_slice %102 {offsets = [0, 0], sizes = [1, 256], strides = [1, 1]} : vector<1x512xf32> to vector<1x256xf32>
    %104 = arith.negf %103 : vector<1x256xf32>
    %105 = math.exp %104 : vector<1x256xf32>
    %cst_22 = arith.constant 1.000000e+00 : f32
    %106 = vector.broadcast %cst_22 : f32 to vector<1x256xf32>
    %107 = arith.addf %106, %105 : vector<1x256xf32>
    %108 = arith.divf %106, %107 : vector<1x256xf32>
    %109 = vector.extract_strided_slice %108 {offsets = [0, 0], sizes = [1, 128], strides = [1, 1]} : vector<1x256xf32> to vector<1x128xf32>
    %110 = vector.extract_strided_slice %108 {offsets = [0, 128], sizes = [1, 128], strides = [1, 1]} : vector<1x256xf32> to vector<1x128xf32>
    %111 = vector.extract_strided_slice %102 {offsets = [0, 256], sizes = [1, 128], strides = [1, 1]} : vector<1x512xf32> to vector<1x128xf32>
    %112 = math.tanh %111 : vector<1x128xf32>
    %113 = vector.extract_strided_slice %102 {offsets = [0, 384], sizes = [1, 128], strides = [1, 1]} : vector<1x512xf32> to vector<1x128xf32>
    %114 = arith.negf %113 : vector<1x128xf32>
    %115 = math.exp %114 : vector<1x128xf32>
    %cst_23 = arith.constant 1.000000e+00 : f32
    %116 = vector.broadcast %cst_23 : f32 to vector<1x128xf32>
    %117 = arith.addf %116, %115 : vector<1x128xf32>
    %118 = arith.divf %116, %117 : vector<1x128xf32>
    %119 = arith.mulf %110, %91 : vector<1x128xf32>
    %120 = arith.mulf %109, %112 : vector<1x128xf32>
    %121 = arith.addf %119, %120 : vector<1x128xf32>
    %122 = math.tanh %121 : vector<1x128xf32>
    %123 = arith.mulf %118, %122 : vector<1x128xf32>
    %c4_i32 = arith.constant 4 : i32
    %124 = arith.index_cast %c4_i32 : i32 to index
    %125 = memref.load %arg0[%124] : memref<8xf32, #tpu.memory_space<smem>>
    %126 = vector.broadcast %125 : f32 to vector<1x512xf32>
    %127 = arith.mulf %126, %0 : vector<1x512xf32>
    %128 = arith.addf %127, %1 : vector<1x512xf32>
    %129 = arith.truncf %123 : vector<1x128xf32> to vector<1x128xbf16>
    %c0_24 = arith.constant 0 : index
    %c0_25 = arith.constant 0 : index
    %130 = vector.load %arg2[%c0_24, %c0_25] : memref<128x512xbf16, #tpu.memory_space<vmem>>, vector<128x512xbf16>
    %cst_26 = arith.constant dense<0.000000e+00> : vector<1x512xf32>
    %131 = tpu.matmul %129, %130, %cst_26 {dimension_numbers = #tpu.dot_dimension_numbers<[1], [0], [0], [1], [0, 0, 1, 1], [], []>} : vector<1x128xbf16>, vector<128x512xbf16>, vector<1x512xf32> -> vector<1x512xf32>
    %132 = arith.addf %128, %131 : vector<1x512xf32>
    %133 = vector.extract_strided_slice %132 {offsets = [0, 0], sizes = [1, 256], strides = [1, 1]} : vector<1x512xf32> to vector<1x256xf32>
    %134 = arith.negf %133 : vector<1x256xf32>
    %135 = math.exp %134 : vector<1x256xf32>
    %cst_27 = arith.constant 1.000000e+00 : f32
    %136 = vector.broadcast %cst_27 : f32 to vector<1x256xf32>
    %137 = arith.addf %136, %135 : vector<1x256xf32>
    %138 = arith.divf %136, %137 : vector<1x256xf32>
    %139 = vector.extract_strided_slice %138 {offsets = [0, 0], sizes = [1, 128], strides = [1, 1]} : vector<1x256xf32> to vector<1x128xf32>
    %140 = vector.extract_strided_slice %138 {offsets = [0, 128], sizes = [1, 128], strides = [1, 1]} : vector<1x256xf32> to vector<1x128xf32>
    %141 = vector.extract_strided_slice %132 {offsets = [0, 256], sizes = [1, 128], strides = [1, 1]} : vector<1x512xf32> to vector<1x128xf32>
    %142 = math.tanh %141 : vector<1x128xf32>
    %143 = vector.extract_strided_slice %132 {offsets = [0, 384], sizes = [1, 128], strides = [1, 1]} : vector<1x512xf32> to vector<1x128xf32>
    %144 = arith.negf %143 : vector<1x128xf32>
    %145 = math.exp %144 : vector<1x128xf32>
    %cst_28 = arith.constant 1.000000e+00 : f32
    %146 = vector.broadcast %cst_28 : f32 to vector<1x128xf32>
    %147 = arith.addf %146, %145 : vector<1x128xf32>
    %148 = arith.divf %146, %147 : vector<1x128xf32>
    %149 = arith.mulf %140, %121 : vector<1x128xf32>
    %150 = arith.mulf %139, %142 : vector<1x128xf32>
    %151 = arith.addf %149, %150 : vector<1x128xf32>
    %152 = math.tanh %151 : vector<1x128xf32>
    %153 = arith.mulf %148, %152 : vector<1x128xf32>
    %c5_i32 = arith.constant 5 : i32
    %154 = arith.index_cast %c5_i32 : i32 to index
    %155 = memref.load %arg0[%154] : memref<8xf32, #tpu.memory_space<smem>>
    %156 = vector.broadcast %155 : f32 to vector<1x512xf32>
    %157 = arith.mulf %156, %0 : vector<1x512xf32>
    %158 = arith.addf %157, %1 : vector<1x512xf32>
    %159 = arith.truncf %153 : vector<1x128xf32> to vector<1x128xbf16>
    %c0_29 = arith.constant 0 : index
    %c0_30 = arith.constant 0 : index
    %160 = vector.load %arg2[%c0_29, %c0_30] : memref<128x512xbf16, #tpu.memory_space<vmem>>, vector<128x512xbf16>
    %cst_31 = arith.constant dense<0.000000e+00> : vector<1x512xf32>
    %161 = tpu.matmul %159, %160, %cst_31 {dimension_numbers = #tpu.dot_dimension_numbers<[1], [0], [0], [1], [0, 0, 1, 1], [], []>} : vector<1x128xbf16>, vector<128x512xbf16>, vector<1x512xf32> -> vector<1x512xf32>
    %162 = arith.addf %158, %161 : vector<1x512xf32>
    %163 = vector.extract_strided_slice %162 {offsets = [0, 0], sizes = [1, 256], strides = [1, 1]} : vector<1x512xf32> to vector<1x256xf32>
    %164 = arith.negf %163 : vector<1x256xf32>
    %165 = math.exp %164 : vector<1x256xf32>
    %cst_32 = arith.constant 1.000000e+00 : f32
    %166 = vector.broadcast %cst_32 : f32 to vector<1x256xf32>
    %167 = arith.addf %166, %165 : vector<1x256xf32>
    %168 = arith.divf %166, %167 : vector<1x256xf32>
    %169 = vector.extract_strided_slice %168 {offsets = [0, 0], sizes = [1, 128], strides = [1, 1]} : vector<1x256xf32> to vector<1x128xf32>
    %170 = vector.extract_strided_slice %168 {offsets = [0, 128], sizes = [1, 128], strides = [1, 1]} : vector<1x256xf32> to vector<1x128xf32>
    %171 = vector.extract_strided_slice %162 {offsets = [0, 256], sizes = [1, 128], strides = [1, 1]} : vector<1x512xf32> to vector<1x128xf32>
    %172 = math.tanh %171 : vector<1x128xf32>
    %173 = vector.extract_strided_slice %162 {offsets = [0, 384], sizes = [1, 128], strides = [1, 1]} : vector<1x512xf32> to vector<1x128xf32>
    %174 = arith.negf %173 : vector<1x128xf32>
    %175 = math.exp %174 : vector<1x128xf32>
    %cst_33 = arith.constant 1.000000e+00 : f32
    %176 = vector.broadcast %cst_33 : f32 to vector<1x128xf32>
    %177 = arith.addf %176, %175 : vector<1x128xf32>
    %178 = arith.divf %176, %177 : vector<1x128xf32>
    %179 = arith.mulf %170, %151 : vector<1x128xf32>
    %180 = arith.mulf %169, %172 : vector<1x128xf32>
    %181 = arith.addf %179, %180 : vector<1x128xf32>
    %182 = math.tanh %181 : vector<1x128xf32>
    %183 = arith.mulf %178, %182 : vector<1x128xf32>
    %c6_i32 = arith.constant 6 : i32
    %184 = arith.index_cast %c6_i32 : i32 to index
    %185 = memref.load %arg0[%184] : memref<8xf32, #tpu.memory_space<smem>>
    %186 = vector.broadcast %185 : f32 to vector<1x512xf32>
    %187 = arith.mulf %186, %0 : vector<1x512xf32>
    %188 = arith.addf %187, %1 : vector<1x512xf32>
    %189 = arith.truncf %183 : vector<1x128xf32> to vector<1x128xbf16>
    %c0_34 = arith.constant 0 : index
    %c0_35 = arith.constant 0 : index
    %190 = vector.load %arg2[%c0_34, %c0_35] : memref<128x512xbf16, #tpu.memory_space<vmem>>, vector<128x512xbf16>
    %cst_36 = arith.constant dense<0.000000e+00> : vector<1x512xf32>
    %191 = tpu.matmul %189, %190, %cst_36 {dimension_numbers = #tpu.dot_dimension_numbers<[1], [0], [0], [1], [0, 0, 1, 1], [], []>} : vector<1x128xbf16>, vector<128x512xbf16>, vector<1x512xf32> -> vector<1x512xf32>
    %192 = arith.addf %188, %191 : vector<1x512xf32>
    %193 = vector.extract_strided_slice %192 {offsets = [0, 0], sizes = [1, 256], strides = [1, 1]} : vector<1x512xf32> to vector<1x256xf32>
    %194 = arith.negf %193 : vector<1x256xf32>
    %195 = math.exp %194 : vector<1x256xf32>
    %cst_37 = arith.constant 1.000000e+00 : f32
    %196 = vector.broadcast %cst_37 : f32 to vector<1x256xf32>
    %197 = arith.addf %196, %195 : vector<1x256xf32>
    %198 = arith.divf %196, %197 : vector<1x256xf32>
    %199 = vector.extract_strided_slice %198 {offsets = [0, 0], sizes = [1, 128], strides = [1, 1]} : vector<1x256xf32> to vector<1x128xf32>
    %200 = vector.extract_strided_slice %198 {offsets = [0, 128], sizes = [1, 128], strides = [1, 1]} : vector<1x256xf32> to vector<1x128xf32>
    %201 = vector.extract_strided_slice %192 {offsets = [0, 256], sizes = [1, 128], strides = [1, 1]} : vector<1x512xf32> to vector<1x128xf32>
    %202 = math.tanh %201 : vector<1x128xf32>
    %203 = vector.extract_strided_slice %192 {offsets = [0, 384], sizes = [1, 128], strides = [1, 1]} : vector<1x512xf32> to vector<1x128xf32>
    %204 = arith.negf %203 : vector<1x128xf32>
    %205 = math.exp %204 : vector<1x128xf32>
    %cst_38 = arith.constant 1.000000e+00 : f32
    %206 = vector.broadcast %cst_38 : f32 to vector<1x128xf32>
    %207 = arith.addf %206, %205 : vector<1x128xf32>
    %208 = arith.divf %206, %207 : vector<1x128xf32>
    %209 = arith.mulf %200, %181 : vector<1x128xf32>
    %210 = arith.mulf %199, %202 : vector<1x128xf32>
    %211 = arith.addf %209, %210 : vector<1x128xf32>
    %212 = math.tanh %211 : vector<1x128xf32>
    %213 = arith.mulf %208, %212 : vector<1x128xf32>
    %c7_i32 = arith.constant 7 : i32
    %214 = arith.index_cast %c7_i32 : i32 to index
    %215 = memref.load %arg0[%214] : memref<8xf32, #tpu.memory_space<smem>>
    %216 = vector.broadcast %215 : f32 to vector<1x512xf32>
    %217 = arith.mulf %216, %0 : vector<1x512xf32>
    %218 = arith.addf %217, %1 : vector<1x512xf32>
    %219 = arith.truncf %213 : vector<1x128xf32> to vector<1x128xbf16>
    %c0_39 = arith.constant 0 : index
    %c0_40 = arith.constant 0 : index
    %220 = vector.load %arg2[%c0_39, %c0_40] : memref<128x512xbf16, #tpu.memory_space<vmem>>, vector<128x512xbf16>
    %cst_41 = arith.constant dense<0.000000e+00> : vector<1x512xf32>
    %221 = tpu.matmul %219, %220, %cst_41 {dimension_numbers = #tpu.dot_dimension_numbers<[1], [0], [0], [1], [0, 0, 1, 1], [], []>} : vector<1x128xbf16>, vector<128x512xbf16>, vector<1x512xf32> -> vector<1x512xf32>
    %222 = arith.addf %218, %221 : vector<1x512xf32>
    %223 = vector.extract_strided_slice %222 {offsets = [0, 0], sizes = [1, 256], strides = [1, 1]} : vector<1x512xf32> to vector<1x256xf32>
    %224 = arith.negf %223 : vector<1x256xf32>
    %225 = math.exp %224 : vector<1x256xf32>
    %cst_42 = arith.constant 1.000000e+00 : f32
    %226 = vector.broadcast %cst_42 : f32 to vector<1x256xf32>
    %227 = arith.addf %226, %225 : vector<1x256xf32>
    %228 = arith.divf %226, %227 : vector<1x256xf32>
    %229 = vector.extract_strided_slice %228 {offsets = [0, 0], sizes = [1, 128], strides = [1, 1]} : vector<1x256xf32> to vector<1x128xf32>
    %230 = vector.extract_strided_slice %228 {offsets = [0, 128], sizes = [1, 128], strides = [1, 1]} : vector<1x256xf32> to vector<1x128xf32>
    %231 = vector.extract_strided_slice %222 {offsets = [0, 256], sizes = [1, 128], strides = [1, 1]} : vector<1x512xf32> to vector<1x128xf32>
    %232 = math.tanh %231 : vector<1x128xf32>
    %233 = vector.extract_strided_slice %222 {offsets = [0, 384], sizes = [1, 128], strides = [1, 1]} : vector<1x512xf32> to vector<1x128xf32>
    %234 = arith.negf %233 : vector<1x128xf32>
    %235 = math.exp %234 : vector<1x128xf32>
    %cst_43 = arith.constant 1.000000e+00 : f32
    %236 = vector.broadcast %cst_43 : f32 to vector<1x128xf32>
    %237 = arith.addf %236, %235 : vector<1x128xf32>
    %238 = arith.divf %236, %237 : vector<1x128xf32>
    %239 = arith.mulf %230, %211 : vector<1x128xf32>
    %240 = arith.mulf %229, %232 : vector<1x128xf32>
    %241 = arith.addf %239, %240 : vector<1x128xf32>
    %242 = math.tanh %241 : vector<1x128xf32>
    %243 = arith.mulf %238, %242 : vector<1x128xf32>
    %c8_i32 = arith.constant 8 : i32
    %c0_44 = arith.constant 0 : index
    %c0_45 = arith.constant 0 : index
    %244 = vector.load %arg4[%c0_44, %c0_45] : memref<1x128xf32, #tpu.memory_space<vmem>>, vector<1x128xf32>
    %245 = arith.mulf %243, %244 : vector<1x128xf32>
    %cst_46 = arith.constant dense<0.000000e+00> : vector<1xf32>
    %246 = vector.multi_reduction <add>, %245, %cst_46 [1] : vector<1x128xf32> to vector<1xf32>
    %247 = vector.shape_cast %246 : vector<1xf32> to vector<1x1xf32>
    %c0_47 = arith.constant 0 : index
    %c0_48 = arith.constant 0 : index
    %248 = vector.load %arg5[%c0_47, %c0_48] : memref<1x1xf32, #tpu.memory_space<vmem>>, vector<1x1xf32>
    %249 = arith.addf %247, %248 : vector<1x1xf32>
    %c0_49 = arith.constant 0 : index
    %c0_50 = arith.constant 0 : index
    %250 = vector.load %arg6[%c0_49, %c0_50] : memref<1x1xf32, #tpu.memory_space<vmem>>, vector<1x1xf32>
    tpu.vector_store %arg6[%c0_49, %c0_50], %249 {strides = array<i32>} : memref<1x1xf32, #tpu.memory_space<vmem>>, vector<1x1xf32>,
    return
  }
}

</mosaic_0001>

<llo_original>
// kernel: lstm_forward.1
$region0: #{lstm_forward.1}
  #allocation0 [shape = 'u32[]', space=smem, size = 0x4, offset = 0x4, fixed_abs, tag = 'smem constant byte address 0x4 - core index']
  #allocation1 [shape = 'u32[144,128]{1,0:T(1,128)}', space=vmem, size = 0x12000, scoped, tag = 'internal scratch']
  #allocation2 [shape = 'f32[1,1]{1,0:T(1,128)S(1)}', space=vmem, size = 0x200, scoped, tag = 'scoped memory for lstm_forward.1']
  %s0 = inlined_call_operand.vmem [shape: f32[8], index: 0, kind: input, shape index: {}]
  %s1 = inlined_call_operand.vmem [shape: f32[1,512], index: 1, kind: input, shape index: {}]
  %s2 = inlined_call_operand.vmem [shape: bf16[128,512], index: 2, kind: input, shape index: {}]
  %s3 = inlined_call_operand.vmem [shape: f32[1,512], index: 3, kind: input, shape index: {}]
  %s4 = inlined_call_operand.vmem [shape: f32[1,128], index: 4, kind: input, shape index: {}]
  %s5 = inlined_call_operand.<no memory space> [shape: f32[1,1], index: 5, kind: input, shape index: {}]
  %s6 = inlined_call_operand.hbm [shape: f32[1,1], index: 6, kind: output, shape index: {}]
  %s7 = sld [smem:[#allocation0]]
  $region38: #{lstm_forward.1} parent=0
    _
  %s9 = ssub.s32 1, %s7
  %s10 = scalar_select 0, %s9, %s7
  %v11 = vstv %s5
  %12 = vst [vmem:[#allocation2] sm:$0x1] %v11
  $region1: #{lstm_forward.1} parent=0
    #allocation3 [shape = 'u8[512]{0}', space=smem, size = 0x200, scoped, tag = 'input window, operand 0, single buffered']
    #allocation4 [shape = 's32[1]{0}', space=sflag, size = 0x4, scoped, tag = 'scoped memory for lstm_forward.1']
    #allocation5 [shape = 's32[1]{0}', space=sflag, size = 0x4, scoped, tag = 'scoped memory for lstm_forward.1']
    #allocation6 [shape = 'u8[512]{0}', space=vmem, size = 0x400, scoped, tag = 'output window, operand 0, single buffered']
    %13 = vsyncpa [#allocation5], 0
    %14 = vsyncpa [#allocation4], 0
    // Predicated region
    $region2: #{lstm_forward.1} parent=1 // pred_check
      _
    $region3: #{lstm_forward.1} parent=1 // pred_check_branch
      %16 = sbr.rel (0) target = $region5
    $region4: #{lstm_forward.1} parent=1 // pred_region
      %s18 = ssub.s32 16, 16
      %19 = vsyncadd [#allocation5], %s18
      %s21 = sshll.u32 %s0, 4
      %s22 = int_to_ptr.vmem [resolvable:$true] %s21
      %24 = dma.vmem_to_smem %s22, 16, [#allocation3], [#allocation5]
    $region5: #{lstm_forward.1} parent=1 // pred_fallthru
      _
    // Predicated region
    $region6: #{lstm_forward.1} parent=1 // pred_check
      _
    $region7: #{lstm_forward.1} parent=1 // pred_check_branch
      %26 = sbr.rel (0) target = $region9
    $region8: #{lstm_forward.1} parent=1 // pred_region
      _
    $region9: #{lstm_forward.1} parent=1 // pred_fallthru
      _
    // Predicated region
    $region10: #{lstm_forward.1} parent=1 // pred_check
      _
    $region11: #{lstm_forward.1} parent=1 // pred_check_branch
      %28 = sbr.rel (0) target = $region13
    $region12: #{lstm_forward.1} parent=1 // pred_region
      _
    $region13: #{lstm_forward.1} parent=1 // pred_fallthru
      _
    // Predicated region
    $region14: #{lstm_forward.1} parent=1 // pred_check
      _
    $region15: #{lstm_forward.1} parent=1 // pred_check_branch
      %30 = sbr.rel (0) target = $region17
    $region16: #{lstm_forward.1} parent=1 // pred_region
      _
    $region17: #{lstm_forward.1} parent=1 // pred_fallthru
      _
    // Predicated region
    $region18: #{lstm_forward.1} parent=1 // pred_check
      _
    $region19: #{lstm_forward.1} parent=1 // pred_check_branch
      %32 = sbr.rel (0) target = $region21
    $region20: #{lstm_forward.1} parent=1 // pred_region
      _
    $region21: #{lstm_forward.1} parent=1 // pred_fallthru
      _
    // Predicated region
    $region22: #{lstm_forward.1} parent=1 // pred_check
      _
    $region23: #{lstm_forward.1} parent=1 // pred_check_branch
      %34 = sbr.rel (0) target = $region25
    $region24: #{lstm_forward.1} parent=1 // pred_region
      _
    $region25: #{lstm_forward.1} parent=1 // pred_fallthru
      _
    // Predicated region
    $region26: #{lstm_forward.1} parent=1 // pred_check
      _
    $region27: #{lstm_forward.1} parent=1 // pred_check_branch
      %36 = sbr.rel (0) target = $region29
    $region28: #{lstm_forward.1} parent=1 // pred_region
      %37 = dma.done [#allocation5], 16
    $region29: #{lstm_forward.1} parent=1 // pred_fallthru
      _
    %38 = sfence
    %v40 = vld [vmem:[%s1] sm:$0xf]
    %v41 = vld [vmem:[%s3] sm:$0xf]
    %s42 = sld [smem:[#allocation3]]
    %v43 = vstv %s42
    %v44 = vmul.f32 %v43, %v40
    %v45 = vadd.f32 %v44, %v41
    %v46 = vld [vmem:[%s2] sm:$0xff]
    %v47 = vld [vmem:[%s2 + $0x8] sm:$0xff]
    %v48 = vld [vmem:[%s2 + $0x10] sm:$0xff]
    %v49 = vld [vmem:[%s2 + $0x18] sm:$0xff]
    %v50 = vld [vmem:[%s2 + $0x20] sm:$0xff]
    %v51 = vld [vmem:[%s2 + $0x28] sm:$0xff]
    %v52 = vld [vmem:[%s2 + $0x30] sm:$0xff]
    %v53 = vld [vmem:[%s2 + $0x38] sm:$0xff]
    %v54 = vld [vmem:[%s2 + $0x40] sm:$0xff]
    %v55 = vld [vmem:[%s2 + $0x48] sm:$0xff]
    %v56 = vld [vmem:[%s2 + $0x50] sm:$0xff]
    %v57 = vld [vmem:[%s2 + $0x58] sm:$0xff]
    %v58 = vld [vmem:[%s2 + $0x60] sm:$0xff]
    %v59 = vld [vmem:[%s2 + $0x68] sm:$0xff]
    %v60 = vld [vmem:[%s2 + $0x70] sm:$0xff]
    %v61 = vld [vmem:[%s2 + $0x78] sm:$0xff]
    %v62 = vld [vmem:[%s2 + $0x80] sm:$0xff]
    %v63 = vld [vmem:[%s2 + $0x88] sm:$0xff]
    %v64 = vld [vmem:[%s2 + $0x90] sm:$0xff]
    %v65 = vld [vmem:[%s2 + $0x98] sm:$0xff]
    %v66 = vld [vmem:[%s2 + $0xa0] sm:$0xff]
    %v67 = vld [vmem:[%s2 + $0xa8] sm:$0xff]
    %v68 = vld [vmem:[%s2 + $0xb0] sm:$0xff]
    %v69 = vld [vmem:[%s2 + $0xb8] sm:$0xff]
    %v70 = vld [vmem:[%s2 + $0xc0] sm:$0xff]
    %v71 = vld [vmem:[%s2 + $0xc8] sm:$0xff]
    %v72 = vld [vmem:[%s2 + $0xd0] sm:$0xff]
    %v73 = vld [vmem:[%s2 + $0xd8] sm:$0xff]
    %v74 = vld [vmem:[%s2 + $0xe0] sm:$0xff]
    %v75 = vld [vmem:[%s2 + $0xe8] sm:$0xff]
    %v76 = vld [vmem:[%s2 + $0xf0] sm:$0xff]
    %v77 = vld [vmem:[%s2 + $0xf8] sm:$0xff]
    %v110 = vunpack.c.l.b16 %v46
    %v111 = vunpack.c.h.b16 %v46
    %v112 = vunpack.c.l.b16 %v47
    %v113 = vunpack.c.h.b16 %v47
    %v114 = vunpack.c.l.b16 %v48
    %v115 = vunpack.c.h.b16 %v48
    %v116 = vunpack.c.l.b16 %v49
    %v117 = vunpack.c.h.b16 %v49
    %v118 = vunpack.c.l.b16 %v50
    %v119 = vunpack.c.h.b16 %v50
    %v120 = vunpack.c.l.b16 %v51
    %v121 = vunpack.c.h.b16 %v51
    %v122 = vunpack.c.l.b16 %v52
    %v123 = vunpack.c.h.b16 %v52
    %v124 = vunpack.c.l.b16 %v53
    %v125 = vunpack.c.h.b16 %v53
    %v126 = vunpack.c.l.b16 %v54
    %v127 = vunpack.c.h.b16 %v54
    %v128 = vunpack.c.l.b16 %v55
    %v129 = vunpack.c.h.b16 %v55
    %v130 = vunpack.c.l.b16 %v56
    %v131 = vunpack.c.h.b16 %v56
    %v132 = vunpack.c.l.b16 %v57
    %v133 = vunpack.c.h.b16 %v57
    %v134 = vunpack.c.l.b16 %v58
    %v135 = vunpack.c.h.b16 %v58
    %v136 = vunpack.c.l.b16 %v59
    %v137 = vunpack.c.h.b16 %v59
    %v138 = vunpack.c.l.b16 %v60
    %v139 = vunpack.c.h.b16 %v60
    %v140 = vunpack.c.l.b16 %v61
    %v141 = vunpack.c.h.b16 %v61
    %v142 = vunpack.c.l.b16 %v62
    %v143 = vunpack.c.h.b16 %v62
    %v144 = vunpack.c.l.b16 %v63
    %v145 = vunpack.c.h.b16 %v63
    %v146 = vunpack.c.l.b16 %v64
    %v147 = vunpack.c.h.b16 %v64
    %v148 = vunpack.c.l.b16 %v65
    %v149 = vunpack.c.h.b16 %v65
    %v150 = vunpack.c.l.b16 %v66
    %v151 = vunpack.c.h.b16 %v66
    %v152 = vunpack.c.l.b16 %v67
    %v153 = vunpack.c.h.b16 %v67
    %v154 = vunpack.c.l.b16 %v68
    %v155 = vunpack.c.h.b16 %v68
    %v156 = vunpack.c.l.b16 %v69
    %v157 = vunpack.c.h.b16 %v69
    %v158 = vunpack.c.l.b16 %v70
    %v159 = vunpack.c.h.b16 %v70
    %v160 = vunpack.c.l.b16 %v71
    %v161 = vunpack.c.h.b16 %v71
    %v162 = vunpack.c.l.b16 %v72
    %v163 = vunpack.c.h.b16 %v72
    %v164 = vunpack.c.l.b16 %v73
    %v165 = vunpack.c.h.b16 %v73
    %v166 = vunpack.c.l.b16 %v74
    %v167 = vunpack.c.h.b16 %v74
    %v168 = vunpack.c.l.b16 %v75
    %v169 = vunpack.c.h.b16 %v75
    %v170 = vunpack.c.l.b16 %v76
    %v171 = vunpack.c.h.b16 %v76
    %v172 = vunpack.c.l.b16 %v77
    %v173 = vunpack.c.h.b16 %v77
    %v174 = vpack.c.b16 %v114, %v110
    %v175 = vpack.c.b16 %v115, %v111
    %v176 = vpack.c.b16 %v116, %v112
    %v177 = vpack.c.b16 %v117, %v113
    %v178 = vpack.c.b16 %v122, %v118
    %v179 = vpack.c.b16 %v123, %v119
    %v180 = vpack.c.b16 %v124, %v120
    %v181 = vpack.c.b16 %v125, %v121
    %v182 = vpack.c.b16 %v130, %v126
    %v183 = vpack.c.b16 %v131, %v127
    %v184 = vpack.c.b16 %v132, %v128
    %v185 = vpack.c.b16 %v133, %v129
    %v186 = vpack.c.b16 %v138, %v134
    %v187 = vpack.c.b16 %v139, %v135
    %v188 = vpack.c.b16 %v140, %v136
    %v189 = vpack.c.b16 %v141, %v137
    %v190 = vpack.c.b16 %v146, %v142
    %v191 = vpack.c.b16 %v147, %v143
    %v192 = vpack.c.b16 %v148, %v144
    %v193 = vpack.c.b16 %v149, %v145
    %v194 = vpack.c.b16 %v154, %v150
    %v195 = vpack.c.b16 %v155, %v151
    %v196 = vpack.c.b16 %v156, %v152
    %v197 = vpack.c.b16 %v157, %v153
    %v198 = vpack.c.b16 %v162, %v158
    %v199 = vpack.c.b16 %v163, %v159
    %v200 = vpack.c.b16 %v164, %v160
    %v201 = vpack.c.b16 %v165, %v161
    %v202 = vpack.c.b16 %v170, %v166
    %v203 = vpack.c.b16 %v171, %v167
    %v204 = vpack.c.b16 %v172, %v168
    %v205 = vpack.c.b16 %v173, %v169
    %238 = vmatprep.subr.bf16.mxu0 %v175
    %239 = vmatpush1.bf16.msra.mxu0 %v174
    %240 = vmatprep.subr.bf16.mxu0 %v179
    %241 = vmatpush1.bf16.msra.mxu0 %v178
    %242 = vmatprep.subr.bf16.mxu0 %v183
    %243 = vmatpush1.bf16.msra.mxu0 %v182
    %244 = vmatprep.subr.bf16.mxu0 %v187
    %245 = vmatpush1.bf16.msra.mxu0 %v186
    %246 = vmatprep.subr.bf16.mxu0 %v191
    %247 = vmatpush1.bf16.msra.mxu0 %v190
    %248 = vmatprep.subr.bf16.mxu0 %v195
    %249 = vmatpush1.bf16.msra.mxu0 %v194
    %250 = vmatprep.subr.bf16.mxu0 %v199
    %251 = vmatpush1.bf16.msra.mxu0 %v198
    %252 = vmatprep.subr.bf16.mxu0 %v203
    %253 = vmatpush1.bf16.msra.mxu0 %v202
    %254 = vmatprep.subr.bf16.mxu0 0
    %255 = vmatpush1.bf16.msra.mxu0 0
    %256 = vmatprep.subr.bf16.mxu0 0
    %257 = vmatpush1.bf16.msra.mxu0 0
    %258 = vmatprep.subr.bf16.mxu0 0
    %259 = vmatpush1.bf16.msra.mxu0 0
    %260 = vmatprep.subr.bf16.mxu0 0
    %261 = vmatpush1.bf16.msra.mxu0 0
    %262 = vmatprep.subr.bf16.mxu0 0
    %263 = vmatpush1.bf16.msra.mxu0 0
    %264 = vmatprep.subr.bf16.mxu0 0
    %265 = vmatpush1.bf16.msra.mxu0 0
    %266 = vmatprep.subr.bf16.mxu0 0
    %267 = vmatpush1.bf16.msra.mxu0 0
    %268 = vmatprep.subr.bf16.mxu0 0
    %269 = vmatpush1.bf16.msra.mxu0 0
    %270 = vmatprep.mubr.bf16.mxu0 0
    %271 = vmatmul.mubr.bf16.gmra.mrb[0].mxu0 0
    %v272 = vpop.f32.mrb[0].mxu0
    %v273 = vadd.f32 0.0, %v272
    %v274 = vpop.f32.mrb[0].mxu0
    %v275 = vadd.f32 0.0, %v274
    %v276 = vpop.f32.mrb[0].mxu0
    %v277 = vpop.f32.mrb[0].mxu0
    %278 = vdwg.mxu0
    %279 = vmatprep.subr.bf16.mxu0 %v177
    %280 = vmatpush1.bf16.msra.mxu0 %v176
    %281 = vmatprep.subr.bf16.mxu0 %v181
    %282 = vmatpush1.bf16.msra.mxu0 %v180
    %283 = vmatprep.subr.bf16.mxu0 %v185
    %284 = vmatpush1.bf16.msra.mxu0 %v184
    %285 = vmatprep.subr.bf16.mxu0 %v189
    %286 = vmatpush1.bf16.msra.mxu0 %v188
    %287 = vmatprep.subr.bf16.mxu0 %v193
    %288 = vmatpush1.bf16.msra.mxu0 %v192
    %289 = vmatprep.subr.bf16.mxu0 %v197
    %290 = vmatpush1.bf16.msra.mxu0 %v196
    %291 = vmatprep.subr.bf16.mxu0 %v201
    %292 = vmatpush1.bf16.msra.mxu0 %v200
    %293 = vmatprep.subr.bf16.mxu0 %v205
    %294 = vmatpush1.bf16.msra.mxu0 %v204
    %295 = vmatprep.subr.bf16.mxu0 0
    %296 = vmatpush1.bf16.msra.mxu0 0
    %297 = vmatprep.subr.bf16.mxu0 0
    %298 = vmatpush1.bf16.msra.mxu0 0
    %299 = vmatprep.subr.bf16.mxu0 0
    %300 = vmatpush1.bf16.msra.mxu0 0
    %301 = vmatprep.subr.bf16.mxu0 0
    %302 = vmatpush1.bf16.msra.mxu0 0
    %303 = vmatprep.subr.bf16.mxu0 0
    %304 = vmatpush1.bf16.msra.mxu0 0
    %305 = vmatprep.subr.bf16.mxu0 0
    %306 = vmatpush1.bf16.msra.mxu0 0
    %307 = vmatprep.subr.bf16.mxu0 0
    %308 = vmatpush1.bf16.msra.mxu0 0
    %309 = vmatprep.subr.bf16.mxu0 0
    %310 = vmatpush1.bf16.msra.mxu0 0
    %311 = vmatprep.mubr.bf16.mxu0 0
    %312 = vmatmul.mubr.bf16.gmra.mrb[0].mxu0 0
    %v313 = vpop.f32.mrb[0].mxu0
    %v314 = vadd.f32 0.0, %v313
    %v315 = vpop.f32.mrb[0].mxu0
    %v316 = vadd.f32 0.0, %v315
    %v317 = vpop.f32.mrb[0].mxu0
    %v318 = vpop.f32.mrb[0].mxu0
    %319 = vdwg.mxu0
    %v324 = vcombine.low %v273, %v275
    %v325 = vcombine.low %v314, %v316
    %v327 = vunpack.c.l.s4 1966171168
    %v328 = vunpack.c.0.s8 %v327
    %v329 = vlaneseq
    %v330 = vshrl.u32 %v329, 7
    %v331 = vsub.s32 %v328, %v330
    %v332 = vrot.slane %v324, %v331
    %v334 = vunpack.c.l.s4 1966171168
    %v335 = vunpack.c.0.s8 %v334
    %v336 = vlaneseq
    %v337 = vshrl.u32 %v336, 7
    %v338 = vsub.s32 %v335, %v337
    %v339 = vrot.slane %v325, %v338
    %v340 = vcombine.low %v332, %v339
    %v342 = vunpack.c.l.s4 1966171168
    %v343 = vunpack.c.0.s8 %v342
    %v344 = vlaneseq
    %v345 = vshrl.u32 %v344, 7
    %v346 = vsub.s32 %v343, %v345
    %v347 = vrot.slane %v340, %v346
    %v349 = vadd.f32 %v45, %v347
    %v350 = vxor.u32 %v349, 2147483648
    %v351 = vmul.f32 %v350, 1.442695
    %v352 = vpow.pop %v351
    %v353 = vadd.f32 %v352, 1.0
    %v354 = vrcp.pop %v353
    %v355 = vmul.f32 1.0, %v354
    %v357 = vrot.slane %v349, 2
    %v359 = vtanh.pop %v357
    %v360 = vrot.slane %v349, 3
    %v362 = vxor.u32 %v360, 2147483648
    %v363 = vmul.f32 %v362, 1.442695
    %v364 = vpow.pop %v363
    %v365 = vadd.f32 %v364, 1.0
    %v366 = vrcp.pop %v365
    %v367 = vmul.f32 1.0, %v366
    %v369 = vrot.slane %v355, 1
    %v371 = vmul.f32 %v369, 0.0
    %v372 = vmul.f32 %v355, %v359
    %v373 = vadd.f32 %v371, %v372
    %v374 = vtanh.pop %v373
    %v375 = vmul.f32 %v367, %v374
    %s376 = sld [smem:[#allocation3 + $0x1]]
    %v377 = vstv %s376
    %v378 = vmul.f32 %v377, %v40
    %v379 = vadd.f32 %v378, %v41
    %v380 = vpack.c.bf16 %v375, %v375
    %381 = vmatprep.subr.bf16.mxu0 %v175
    %382 = vmatpush1.bf16.msra.mxu0 %v174
    %383 = vmatprep.subr.bf16.mxu0 %v179
    %384 = vmatpush1.bf16.msra.mxu0 %v178
    %385 = vmatprep.subr.bf16.mxu0 %v183
    %386 = vmatpush1.bf16.msra.mxu0 %v182
    %387 = vmatprep.subr.bf16.mxu0 %v187
    %388 = vmatpush1.bf16.msra.mxu0 %v186
    %389 = vmatprep.subr.bf16.mxu0 %v191
    %390 = vmatpush1.bf16.msra.mxu0 %v190
    %391 = vmatprep.subr.bf16.mxu0 %v195
    %392 = vmatpush1.bf16.msra.mxu0 %v194
    %393 = vmatprep.subr.bf16.mxu0 %v199
    %394 = vmatpush1.bf16.msra.mxu0 %v198
    %395 = vmatprep.subr.bf16.mxu0 %v203
    %396 = vmatpush1.bf16.msra.mxu0 %v202
    %397 = vmatprep.subr.bf16.mxu0 0
    %398 = vmatpush1.bf16.msra.mxu0 0
    %399 = vmatprep.subr.bf16.mxu0 0
    %400 = vmatpush1.bf16.msra.mxu0 0
    %401 = vmatprep.subr.bf16.mxu0 0
    %402 = vmatpush1.bf16.msra.mxu0 0
    %403 = vmatprep.subr.bf16.mxu0 0
    %404 = vmatpush1.bf16.msra.mxu0 0
    %405 = vmatprep.subr.bf16.mxu0 0
    %406 = vmatpush1.bf16.msra.mxu0 0
    %407 = vmatprep.subr.bf16.mxu0 0
    %408 = vmatpush1.bf16.msra.mxu0 0
    %409 = vmatprep.subr.bf16.mxu0 0
    %410 = vmatpush1.bf16.msra.mxu0 0
    %411 = vmatprep.subr.bf16.mxu0 0
    %412 = vmatpush1.bf16.msra.mxu0 0
    %413 = vmatprep.mubr.bf16.mxu0 0
    %414 = vmatmul.mubr.bf16.gmra.mrb[0].mxu0 %v380
    %v415 = vpop.f32.mrb[0].mxu0
    %v416 = vadd.f32 0.0, %v415
    %v417 = vpop.f32.mrb[0].mxu0
    %v418 = vadd.f32 0.0, %v417
    %v419 = vpop.f32.mrb[0].mxu0
    %v420 = vpop.f32.mrb[0].mxu0
    %421 = vdwg.mxu0
    %422 = vmatprep.subr.bf16.mxu0 %v177
    %423 = vmatpush1.bf16.msra.mxu0 %v176
    %424 = vmatprep.subr.bf16.mxu0 %v181
    %425 = vmatpush1.bf16.msra.mxu0 %v180
    %426 = vmatprep.subr.bf16.mxu0 %v185
    %427 = vmatpush1.bf16.msra.mxu0 %v184
    %428 = vmatprep.subr.bf16.mxu0 %v189
    %429 = vmatpush1.bf16.msra.mxu0 %v188
    %430 = vmatprep.subr.bf16.mxu0 %v193
    %431 = vmatpush1.bf16.msra.mxu0 %v192
    %432 = vmatprep.subr.bf16.mxu0 %v197
    %433 = vmatpush1.bf16.msra.mxu0 %v196
    %434 = vmatprep.subr.bf16.mxu0 %v201
    %435 = vmatpush1.bf16.msra.mxu0 %v200
    %436 = vmatprep.subr.bf16.mxu0 %v205
    %437 = vmatpush1.bf16.msra.mxu0 %v204
    %438 = vmatprep.subr.bf16.mxu0 0
    %439 = vmatpush1.bf16.msra.mxu0 0
    %440 = vmatprep.subr.bf16.mxu0 0
    %441 = vmatpush1.bf16.msra.mxu0 0
    %442 = vmatprep.subr.bf16.mxu0 0
    %443 = vmatpush1.bf16.msra.mxu0 0
    %444 = vmatprep.subr.bf16.mxu0 0
    %445 = vmatpush1.bf16.msra.mxu0 0
    %446 = vmatprep.subr.bf16.mxu0 0
    %447 = vmatpush1.bf16.msra.mxu0 0
    %448 = vmatprep.subr.bf16.mxu0 0
    %449 = vmatpush1.bf16.msra.mxu0 0
    %450 = vmatprep.subr.bf16.mxu0 0
    %451 = vmatpush1.bf16.msra.mxu0 0
    %452 = vmatprep.subr.bf16.mxu0 0
    %453 = vmatpush1.bf16.msra.mxu0 0
    %454 = vmatprep.mubr.bf16.mxu0 0
    %455 = vmatmul.mubr.bf16.gmra.mrb[0].mxu0 %v380
    %v456 = vpop.f32.mrb[0].mxu0
    %v457 = vadd.f32 0.0, %v456
    %v458 = vpop.f32.mrb[0].mxu0
    %v459 = vadd.f32 0.0, %v458
    %v460 = vpop.f32.mrb[0].mxu0
    %v461 = vpop.f32.mrb[0].mxu0
    %462 = vdwg.mxu0
    %v467 = vcombine.low %v416, %v418
    %v468 = vcombine.low %v457, %v459
    %v470 = vunpack.c.l.s4 1966171168
    %v471 = vunpack.c.0.s8 %v470
    %v472 = vlaneseq
    %v473 = vshrl.u32 %v472, 7
    %v474 = vsub.s32 %v471, %v473
    %v475 = vrot.slane %v467, %v474
    %v477 = vunpack.c.l.s4 1966171168
    %v478 = vunpack.c.0.s8 %v477
    %v479 = vlaneseq
    %v480 = vshrl.u32 %v479, 7
    %v481 = vsub.s32 %v478, %v480
    %v482 = vrot.slane %v468, %v481
    %v483 = vcombine.low %v475, %v482
    %v485 = vunpack.c.l.s4 1966171168
    %v486 = vunpack.c.0.s8 %v485
    %v487 = vlaneseq
    %v488 = vshrl.u32 %v487, 7
    %v489 = vsub.s32 %v486, %v488
    %v490 = vrot.slane %v483, %v489
    %v492 = vadd.f32 %v379, %v490
    %v493 = vxor.u32 %v492, 2147483648
    %v494 = vmul.f32 %v493, 1.442695
    %v495 = vpow.pop %v494
    %v496 = vadd.f32 %v495, 1.0
    %v497 = vrcp.pop %v496
    %v498 = vmul.f32 1.0, %v497
    %v500 = vrot.slane %v492, 2
    %v502 = vtanh.pop %v500
    %v503 = vrot.slane %v492, 3
    %v505 = vxor.u32 %v503, 2147483648
    %v506 = vmul.f32 %v505, 1.442695
    %v507 = vpow.pop %v506
    %v508 = vadd.f32 %v507, 1.0
    %v509 = vrcp.pop %v508
    %v510 = vmul.f32 1.0, %v509
    %v512 = vrot.slane %v498, 1
    %v514 = vmul.f32 %v512, %v373
    %v515 = vmul.f32 %v498, %v502
    %v516 = vadd.f32 %v514, %v515
    %v517 = vtanh.pop %v516
    %v518 = vmul.f32 %v510, %v517
    %s519 = sld [smem:[#allocation3 + $0x2]]
    %v520 = vstv %s519
    %v521 = vmul.f32 %v520, %v40
    %v522 = vadd.f32 %v521, %v41
    %v523 = vpack.c.bf16 %v518, %v518
    %524 = vmatprep.subr.bf16.mxu0 %v175
    %525 = vmatpush1.bf16.msra.mxu0 %v174
    %526 = vmatprep.subr.bf16.mxu0 %v179
    %527 = vmatpush1.bf16.msra.mxu0 %v178
    %528 = vmatprep.subr.bf16.mxu0 %v183
    %529 = vmatpush1.bf16.msra.mxu0 %v182
    %530 = vmatprep.subr.bf16.mxu0 %v187
    %531 = vmatpush1.bf16.msra.mxu0 %v186
    %532 = vmatprep.subr.bf16.mxu0 %v191
    %533 = vmatpush1.bf16.msra.mxu0 %v190
    %534 = vmatprep.subr.bf16.mxu0 %v195
    %535 = vmatpush1.bf16.msra.mxu0 %v194
    %536 = vmatprep.subr.bf16.mxu0 %v199
    %537 = vmatpush1.bf16.msra.mxu0 %v198
    %538 = vmatprep.subr.bf16.mxu0 %v203
    %539 = vmatpush1.bf16.msra.mxu0 %v202
    %540 = vmatprep.subr.bf16.mxu0 0
    %541 = vmatpush1.bf16.msra.mxu0 0
    %542 = vmatprep.subr.bf16.mxu0 0
    %543 = vmatpush1.bf16.msra.mxu0 0
    %544 = vmatprep.subr.bf16.mxu0 0
    %545 = vmatpush1.bf16.msra.mxu0 0
    %546 = vmatprep.subr.bf16.mxu0 0
    %547 = vmatpush1.bf16.msra.mxu0 0
    %548 = vmatprep.subr.bf16.mxu0 0
    %549 = vmatpush1.bf16.msra.mxu0 0
    %550 = vmatprep.subr.bf16.mxu0 0
    %551 = vmatpush1.bf16.msra.mxu0 0
    %552 = vmatprep.subr.bf16.mxu0 0
    %553 = vmatpush1.bf16.msra.mxu0 0
    %554 = vmatprep.subr.bf16.mxu0 0
    %555 = vmatpush1.bf16.msra.mxu0 0
    %556 = vmatprep.mubr.bf16.mxu0 0
    %557 = vmatmul.mubr.bf16.gmra.mrb[0].mxu0 %v523
    %v558 = vpop.f32.mrb[0].mxu0
    %v559 = vadd.f32 0.0, %v558
    %v560 = vpop.f32.mrb[0].mxu0
    %v561 = vadd.f32 0.0, %v560
    %v562 = vpop.f32.mrb[0].mxu0
    %v563 = vpop.f32.mrb[0].mxu0
    %564 = vdwg.mxu0
    %565 = vmatprep.subr.bf16.mxu0 %v177
    %566 = vmatpush1.bf16.msra.mxu0 %v176
    %567 = vmatprep.subr.bf16.mxu0 %v181
    %568 = vmatpush1.bf16.msra.mxu0 %v180
    %569 = vmatprep.subr.bf16.mxu0 %v185
    %570 = vmatpush1.bf16.msra.mxu0 %v184
    %571 = vmatprep.subr.bf16.mxu0 %v189
    %572 = vmatpush1.bf16.msra.mxu0 %v188
    %573 = vmatprep.subr.bf16.mxu0 %v193
    %574 = vmatpush1.bf16.msra.mxu0 %v192
    %575 = vmatprep.subr.bf16.mxu0 %v197
    %576 = vmatpush1.bf16.msra.mxu0 %v196
    %577 = vmatprep.subr.bf16.mxu0 %v201
    %578 = vmatpush1.bf16.msra.mxu0 %v200
    %579 = vmatprep.subr.bf16.mxu0 %v205
    %580 = vmatpush1.bf16.msra.mxu0 %v204
    %581 = vmatprep.subr.bf16.mxu0 0
    %582 = vmatpush1.bf16.msra.mxu0 0
    %583 = vmatprep.subr.bf16.mxu0 0
    %584 = vmatpush1.bf16.msra.mxu0 0
    %585 = vmatprep.subr.bf16.mxu0 0
    %586 = vmatpush1.bf16.msra.mxu0 0
    %587 = vmatprep.subr.bf16.mxu0 0
    %588 = vmatpush1.bf16.msra.mxu0 0
    %589 = vmatprep.subr.bf16.mxu0 0
    %590 = vmatpush1.bf16.msra.mxu0 0
    %591 = vmatprep.subr.bf16.mxu0 0
    %592 = vmatpush1.bf16.msra.mxu0 0
    %593 = vmatprep.subr.bf16.mxu0 0
    %594 = vmatpush1.bf16.msra.mxu0 0
    %595 = vmatprep.subr.bf16.mxu0 0
    %596 = vmatpush1.bf16.msra.mxu0 0
    %597 = vmatprep.mubr.bf16.mxu0 0
    %598 = vmatmul.mubr.bf16.gmra.mrb[0].mxu0 %v523
    %v599 = vpop.f32.mrb[0].mxu0
    %v600 = vadd.f32 0.0, %v599
    %v601 = vpop.f32.mrb[0].mxu0
    %v602 = vadd.f32 0.0, %v601
    %v603 = vpop.f32.mrb[0].mxu0
    %v604 = vpop.f32.mrb[0].mxu0
    %605 = vdwg.mxu0
    %v610 = vcombine.low %v559, %v561
    %v611 = vcombine.low %v600, %v602
    %v613 = vunpack.c.l.s4 1966171168
    %v614 = vunpack.c.0.s8 %v613
    %v615 = vlaneseq
    %v616 = vshrl.u32 %v615, 7
    %v617 = vsub.s32 %v614, %v616
    %v618 = vrot.slane %v610, %v617
    %v620 = vunpack.c.l.s4 1966171168
    %v621 = vunpack.c.0.s8 %v620
    %v622 = vlaneseq
    %v623 = vshrl.u32 %v622, 7
    %v624 = vsub.s32 %v621, %v623
    %v625 = vrot.slane %v611, %v624
    %v626 = vcombine.low %v618, %v625
    %v628 = vunpack.c.l.s4 1966171168
    %v629 = vunpack.c.0.s8 %v628
    %v630 = vlaneseq
    %v631 = vshrl.u32 %v630, 7
    %v632 = vsub.s32 %v629, %v631
    %v633 = vrot.slane %v626, %v632
    %v635 = vadd.f32 %v522, %v633
    %v636 = vxor.u32 %v635, 2147483648
    %v637 = vmul.f32 %v636, 1.442695
    %v638 = vpow.pop %v637
    %v639 = vadd.f32 %v638, 1.0
    %v640 = vrcp.pop %v639
    %v641 = vmul.f32 1.0, %v640
    %v643 = vrot.slane %v635, 2
    %v645 = vtanh.pop %v643
    %v646 = vrot.slane %v635, 3
    %v648 = vxor.u32 %v646, 2147483648
    %v649 = vmul.f32 %v648, 1.442695
    %v650 = vpow.pop %v649
    %v651 = vadd.f32 %v650, 1.0
    %v652 = vrcp.pop %v651
    %v653 = vmul.f32 1.0, %v652
    %v655 = vrot.slane %v641, 1
    %v657 = vmul.f32 %v655, %v516
    %v658 = vmul.f32 %v641, %v645
    %v659 = vadd.f32 %v657, %v658
    %v660 = vtanh.pop %v659
    %v661 = vmul.f32 %v653, %v660
    %s662 = sld [smem:[#allocation3 + $0x3]]
    %v663 = vstv %s662
    %v664 = vmul.f32 %v663, %v40
    %v665 = vadd.f32 %v664, %v41
    %v666 = vpack.c.bf16 %v661, %v661
    %667 = vmatprep.subr.bf16.mxu0 %v175
    %668 = vmatpush1.bf16.msra.mxu0 %v174
    %669 = vmatprep.subr.bf16.mxu0 %v179
    %670 = vmatpush1.bf16.msra.mxu0 %v178
    %671 = vmatprep.subr.bf16.mxu0 %v183
    %672 = vmatpush1.bf16.msra.mxu0 %v182
    %673 = vmatprep.subr.bf16.mxu0 %v187
    %674 = vmatpush1.bf16.msra.mxu0 %v186
    %675 = vmatprep.subr.bf16.mxu0 %v191
    %676 = vmatpush1.bf16.msra.mxu0 %v190
    %677 = vmatprep.subr.bf16.mxu0 %v195
    %678 = vmatpush1.bf16.msra.mxu0 %v194
    %679 = vmatprep.subr.bf16.mxu0 %v199
    %680 = vmatpush1.bf16.msra.mxu0 %v198
    %681 = vmatprep.subr.bf16.mxu0 %v203
    %682 = vmatpush1.bf16.msra.mxu0 %v202
    %683 = vmatprep.subr.bf16.mxu0 0
    %684 = vmatpush1.bf16.msra.mxu0 0
    %685 = vmatprep.subr.bf16.mxu0 0
    %686 = vmatpush1.bf16.msra.mxu0 0
    %687 = vmatprep.subr.bf16.mxu0 0
    %688 = vmatpush1.bf16.msra.mxu0 0
    %689 = vmatprep.subr.bf16.mxu0 0
    %690 = vmatpush1.bf16.msra.mxu0 0
    %691 = vmatprep.subr.bf16.mxu0 0
    %692 = vmatpush1.bf16.msra.mxu0 0
    %693 = vmatprep.subr.bf16.mxu0 0
    %694 = vmatpush1.bf16.msra.mxu0 0
    %695 = vmatprep.subr.bf16.mxu0 0
    %696 = vmatpush1.bf16.msra.mxu0 0
    %697 = vmatprep.subr.bf16.mxu0 0
    %698 = vmatpush1.bf16.msra.mxu0 0
    %699 = vmatprep.mubr.bf16.mxu0 0
    %700 = vmatmul.mubr.bf16.gmra.mrb[0].mxu0 %v666
    %v701 = vpop.f32.mrb[0].mxu0
    %v702 = vadd.f32 0.0, %v701
    %v703 = vpop.f32.mrb[0].mxu0
    %v704 = vadd.f32 0.0, %v703
    %v705 = vpop.f32.mrb[0].mxu0
    %v706 = vpop.f32.mrb[0].mxu0
    %707 = vdwg.mxu0
    %708 = vmatprep.subr.bf16.mxu0 %v177
    %709 = vmatpush1.bf16.msra.mxu0 %v176
    %710 = vmatprep.subr.bf16.mxu0 %v181
    %711 = vmatpush1.bf16.msra.mxu0 %v180
    %712 = vmatprep.subr.bf16.mxu0 %v185
    %713 = vmatpush1.bf16.msra.mxu0 %v184
    %714 = vmatprep.subr.bf16.mxu0 %v189
    %715 = vmatpush1.bf16.msra.mxu0 %v188
    %716 = vmatprep.subr.bf16.mxu0 %v193
    %717 = vmatpush1.bf16.msra.mxu0 %v192
    %718 = vmatprep.subr.bf16.mxu0 %v197
    %719 = vmatpush1.bf16.msra.mxu0 %v196
    %720 = vmatprep.subr.bf16.mxu0 %v201
    %721 = vmatpush1.bf16.msra.mxu0 %v200
    %722 = vmatprep.subr.bf16.mxu0 %v205
    %723 = vmatpush1.bf16.msra.mxu0 %v204
    %724 = vmatprep.subr.bf16.mxu0 0
    %725 = vmatpush1.bf16.msra.mxu0 0
    %726 = vmatprep.subr.bf16.mxu0 0
    %727 = vmatpush1.bf16.msra.mxu0 0
    %728 = vmatprep.subr.bf16.mxu0 0
    %729 = vmatpush1.bf16.msra.mxu0 0
    %730 = vmatprep.subr.bf16.mxu0 0
    %731 = vmatpush1.bf16.msra.mxu0 0
    %732 = vmatprep.subr.bf16.mxu0 0
    %733 = vmatpush1.bf16.msra.mxu0 0
    %734 = vmatprep.subr.bf16.mxu0 0
    %735 = vmatpush1.bf16.msra.mxu0 0
    %736 = vmatprep.subr.bf16.mxu0 0
    %737 = vmatpush1.bf16.msra.mxu0 0
    %738 = vmatprep.subr.bf16.mxu0 0
    %739 = vmatpush1.bf16.msra.mxu0 0
    %740 = vmatprep.mubr.bf16.mxu0 0
    %741 = vmatmul.mubr.bf16.gmra.mrb[0].mxu0 %v666
    %v742 = vpop.f32.mrb[0].mxu0
    %v743 = vadd.f32 0.0, %v742
    %v744 = vpop.f32.mrb[0].mxu0
    %v745 = vadd.f32 0.0, %v744
    %v746 = vpop.f32.mrb[0].mxu0
    %v747 = vpop.f32.mrb[0].mxu0
    %748 = vdwg.mxu0
    %v753 = vcombine.low %v702, %v704
    %v754 = vcombine.low %v743, %v745
    %v756 = vunpack.c.l.s4 1966171168
    %v757 = vunpack.c.0.s8 %v756
    %v758 = vlaneseq
    %v759 = vshrl.u32 %v758, 7
    %v760 = vsub.s32 %v757, %v759
    %v761 = vrot.slane %v753, %v760
    %v763 = vunpack.c.l.s4 1966171168
    %v764 = vunpack.c.0.s8 %v763
    %v765 = vlaneseq
    %v766 = vshrl.u32 %v765, 7
    %v767 = vsub.s32 %v764, %v766
    %v768 = vrot.slane %v754, %v767
    %v769 = vcombine.low %v761, %v768
    %v771 = vunpack.c.l.s4 1966171168
    %v772 = vunpack.c.0.s8 %v771
    %v773 = vlaneseq
    %v774 = vshrl.u32 %v773, 7
    %v775 = vsub.s32 %v772, %v774
    %v776 = vrot.slane %v769, %v775
    %v778 = vadd.f32 %v665, %v776
    %v779 = vxor.u32 %v778, 2147483648
    %v780 = vmul.f32 %v779, 1.442695
    %v781 = vpow.pop %v780
    %v782 = vadd.f32 %v781, 1.0
    %v783 = vrcp.pop %v782
    %v784 = vmul.f32 1.0, %v783
    %v786 = vrot.slane %v778, 2
    %v788 = vtanh.pop %v786
    %v789 = vrot.slane %v778, 3
    %v791 = vxor.u32 %v789, 2147483648
    %v792 = vmul.f32 %v791, 1.442695
    %v793 = vpow.pop %v792
    %v794 = vadd.f32 %v793, 1.0
    %v795 = vrcp.pop %v794
    %v796 = vmul.f32 1.0, %v795
    %v798 = vrot.slane %v784, 1
    %v800 = vmul.f32 %v798, %v659
    %v801 = vmul.f32 %v784, %v788
    %v802 = vadd.f32 %v800, %v801
    %v803 = vtanh.pop %v802
    %v804 = vmul.f32 %v796, %v803
    %s805 = sld [smem:[#allocation3 + $0x4]]
    %v806 = vstv %s805
    %v807 = vmul.f32 %v806, %v40
    %v808 = vadd.f32 %v807, %v41
    %v809 = vpack.c.bf16 %v804, %v804
    %810 = vmatprep.subr.bf16.mxu0 %v175
    %811 = vmatpush1.bf16.msra.mxu0 %v174
    %812 = vmatprep.subr.bf16.mxu0 %v179
    %813 = vmatpush1.bf16.msra.mxu0 %v178
    %814 = vmatprep.subr.bf16.mxu0 %v183
    %815 = vmatpush1.bf16.msra.mxu0 %v182
    %816 = vmatprep.subr.bf16.mxu0 %v187
    %817 = vmatpush1.bf16.msra.mxu0 %v186
    %818 = vmatprep.subr.bf16.mxu0 %v191
    %819 = vmatpush1.bf16.msra.mxu0 %v190
    %820 = vmatprep.subr.bf16.mxu0 %v195
    %821 = vmatpush1.bf16.msra.mxu0 %v194
    %822 = vmatprep.subr.bf16.mxu0 %v199
    %823 = vmatpush1.bf16.msra.mxu0 %v198
    %824 = vmatprep.subr.bf16.mxu0 %v203
    %825 = vmatpush1.bf16.msra.mxu0 %v202
    %826 = vmatprep.subr.bf16.mxu0 0
    %827 = vmatpush1.bf16.msra.mxu0 0
    %828 = vmatprep.subr.bf16.mxu0 0
    %829 = vmatpush1.bf16.msra.mxu0 0
    %830 = vmatprep.subr.bf16.mxu0 0
    %831 = vmatpush1.bf16.msra.mxu0 0
    %832 = vmatprep.subr.bf16.mxu0 0
    %833 = vmatpush1.bf16.msra.mxu0 0
    %834 = vmatprep.subr.bf16.mxu0 0
    %835 = vmatpush1.bf16.msra.mxu0 0
    %836 = vmatprep.subr.bf16.mxu0 0
    %837 = vmatpush1.bf16.msra.mxu0 0
    %838 = vmatprep.subr.bf16.mxu0 0
    %839 = vmatpush1.bf16.msra.mxu0 0
    %840 = vmatprep.subr.bf16.mxu0 0
    %841 = vmatpush1.bf16.msra.mxu0 0
    %842 = vmatprep.mubr.bf16.mxu0 0
    %843 = vmatmul.mubr.bf16.gmra.mrb[0].mxu0 %v809
    %v844 = vpop.f32.mrb[0].mxu0
    %v845 = vadd.f32 0.0, %v844
    %v846 = vpop.f32.mrb[0].mxu0
    %v847 = vadd.f32 0.0, %v846
    %v848 = vpop.f32.mrb[0].mxu0
    %v849 = vpop.f32.mrb[0].mxu0
    %850 = vdwg.mxu0
    %851 = vmatprep.subr.bf16.mxu0 %v177
    %852 = vmatpush1.bf16.msra.mxu0 %v176
    %853 = vmatprep.subr.bf16.mxu0 %v181
    %854 = vmatpush1.bf16.msra.mxu0 %v180
    %855 = vmatprep.subr.bf16.mxu0 %v185
    %856 = vmatpush1.bf16.msra.mxu0 %v184
    %857 = vmatprep.subr.bf16.mxu0 %v189
    %858 = vmatpush1.bf16.msra.mxu0 %v188
    %859 = vmatprep.subr.bf16.mxu0 %v193
    %860 = vmatpush1.bf16.msra.mxu0 %v192
    %861 = vmatprep.subr.bf16.mxu0 %v197
    %862 = vmatpush1.bf16.msra.mxu0 %v196
    %863 = vmatprep.subr.bf16.mxu0 %v201
    %864 = vmatpush1.bf16.msra.mxu0 %v200
    %865 = vmatprep.subr.bf16.mxu0 %v205
    %866 = vmatpush1.bf16.msra.mxu0 %v204
    %867 = vmatprep.subr.bf16.mxu0 0
    %868 = vmatpush1.bf16.msra.mxu0 0
    %869 = vmatprep.subr.bf16.mxu0 0
    %870 = vmatpush1.bf16.msra.mxu0 0
    %871 = vmatprep.subr.bf16.mxu0 0
    %872 = vmatpush1.bf16.msra.mxu0 0
    %873 = vmatprep.subr.bf16.mxu0 0
    %874 = vmatpush1.bf16.msra.mxu0 0
    %875 = vmatprep.subr.bf16.mxu0 0
    %876 = vmatpush1.bf16.msra.mxu0 0
    %877 = vmatprep.subr.bf16.mxu0 0
    %878 = vmatpush1.bf16.msra.mxu0 0
    %879 = vmatprep.subr.bf16.mxu0 0
    %880 = vmatpush1.bf16.msra.mxu0 0
    %881 = vmatprep.subr.bf16.mxu0 0
    %882 = vmatpush1.bf16.msra.mxu0 0
    %883 = vmatprep.mubr.bf16.mxu0 0
    %884 = vmatmul.mubr.bf16.gmra.mrb[0].mxu0 %v809
    %v885 = vpop.f32.mrb[0].mxu0
    %v886 = vadd.f32 0.0, %v885
    %v887 = vpop.f32.mrb[0].mxu0
    %v888 = vadd.f32 0.0, %v887
    %v889 = vpop.f32.mrb[0].mxu0
    %v890 = vpop.f32.mrb[0].mxu0
    %891 = vdwg.mxu0
    %v896 = vcombine.low %v845, %v847
    %v897 = vcombine.low %v886, %v888
    %v899 = vunpack.c.l.s4 1966171168
    %v900 = vunpack.c.0.s8 %v899
    %v901 = vlaneseq
    %v902 = vshrl.u32 %v901, 7
    %v903 = vsub.s32 %v900, %v902
    %v904 = vrot.slane %v896, %v903
    %v906 = vunpack.c.l.s4 1966171168
    %v907 = vunpack.c.0.s8 %v906
    %v908 = vlaneseq
    %v909 = vshrl.u32 %v908, 7
    %v910 = vsub.s32 %v907, %v909
    %v911 = vrot.slane %v897, %v910
    %v912 = vcombine.low %v904, %v911
    %v914 = vunpack.c.l.s4 1966171168
    %v915 = vunpack.c.0.s8 %v914
    %v916 = vlaneseq
    %v917 = vshrl.u32 %v916, 7
    %v918 = vsub.s32 %v915, %v917
    %v919 = vrot.slane %v912, %v918
    %v921 = vadd.f32 %v808, %v919
    %v922 = vxor.u32 %v921, 2147483648
    %v923 = vmul.f32 %v922, 1.442695
    %v924 = vpow.pop %v923
    %v925 = vadd.f32 %v924, 1.0
    %v926 = vrcp.pop %v925
    %v927 = vmul.f32 1.0, %v926
    %v929 = vrot.slane %v921, 2
    %v931 = vtanh.pop %v929
    %v932 = vrot.slane %v921, 3
    %v934 = vxor.u32 %v932, 2147483648
    %v935 = vmul.f32 %v934, 1.442695
    %v936 = vpow.pop %v935
    %v937 = vadd.f32 %v936, 1.0
    %v938 = vrcp.pop %v937
    %v939 = vmul.f32 1.0, %v938
    %v941 = vrot.slane %v927, 1
    %v943 = vmul.f32 %v941, %v802
    %v944 = vmul.f32 %v927, %v931
    %v945 = vadd.f32 %v943, %v944
    %v946 = vtanh.pop %v945
    %v947 = vmul.f32 %v939, %v946
    %s948 = sld [smem:[#allocation3 + $0x5]]
    %v949 = vstv %s948
    %v950 = vmul.f32 %v949, %v40
    %v951 = vadd.f32 %v950, %v41
    %v952 = vpack.c.bf16 %v947, %v947
    %953 = vmatprep.subr.bf16.mxu0 %v175
    %954 = vmatpush1.bf16.msra.mxu0 %v174
    %955 = vmatprep.subr.bf16.mxu0 %v179
    %956 = vmatpush1.bf16.msra.mxu0 %v178
    %957 = vmatprep.subr.bf16.mxu0 %v183
    %958 = vmatpush1.bf16.msra.mxu0 %v182
    %959 = vmatprep.subr.bf16.mxu0 %v187
    %960 = vmatpush1.bf16.msra.mxu0 %v186
    %961 = vmatprep.subr.bf16.mxu0 %v191
    %962 = vmatpush1.bf16.msra.mxu0 %v190
    %963 = vmatprep.subr.bf16.mxu0 %v195
    %964 = vmatpush1.bf16.msra.mxu0 %v194
    %965 = vmatprep.subr.bf16.mxu0 %v199
    %966 = vmatpush1.bf16.msra.mxu0 %v198
    %967 = vmatprep.subr.bf16.mxu0 %v203
    %968 = vmatpush1.bf16.msra.mxu0 %v202
    %969 = vmatprep.subr.bf16.mxu0 0
    %970 = vmatpush1.bf16.msra.mxu0 0
    %971 = vmatprep.subr.bf16.mxu0 0
    %972 = vmatpush1.bf16.msra.mxu0 0
    %973 = vmatprep.subr.bf16.mxu0 0
    %974 = vmatpush1.bf16.msra.mxu0 0
    %975 = vmatprep.subr.bf16.mxu0 0
    %976 = vmatpush1.bf16.msra.mxu0 0
    %977 = vmatprep.subr.bf16.mxu0 0
    %978 = vmatpush1.bf16.msra.mxu0 0
    %979 = vmatprep.subr.bf16.mxu0 0
    %980 = vmatpush1.bf16.msra.mxu0 0
    %981 = vmatprep.subr.bf16.mxu0 0
    %982 = vmatpush1.bf16.msra.mxu0 0
    %983 = vmatprep.subr.bf16.mxu0 0
    %984 = vmatpush1.bf16.msra.mxu0 0
    %985 = vmatprep.mubr.bf16.mxu0 0
    %986 = vmatmul.mubr.bf16.gmra.mrb[0].mxu0 %v952
    %v987 = vpop.f32.mrb[0].mxu0
    %v988 = vadd.f32 0.0, %v987
    %v989 = vpop.f32.mrb[0].mxu0
    %v990 = vadd.f32 0.0, %v989
    %v991 = vpop.f32.mrb[0].mxu0
    %v992 = vpop.f32.mrb[0].mxu0
    %993 = vdwg.mxu0
    %994 = vmatprep.subr.bf16.mxu0 %v177
    %995 = vmatpush1.bf16.msra.mxu0 %v176
    %996 = vmatprep.subr.bf16.mxu0 %v181
    %997 = vmatpush1.bf16.msra.mxu0 %v180
    %998 = vmatprep.subr.bf16.mxu0 %v185
    %999 = vmatpush1.bf16.msra.mxu0 %v184
    %1000 = vmatprep.subr.bf16.mxu0 %v189
    %1001 = vmatpush1.bf16.msra.mxu0 %v188
    %1002 = vmatprep.subr.bf16.mxu0 %v193
    %1003 = vmatpush1.bf16.msra.mxu0 %v192
    %1004 = vmatprep.subr.bf16.mxu0 %v197
    %1005 = vmatpush1.bf16.msra.mxu0 %v196
    %1006 = vmatprep.subr.bf16.mxu0 %v201
    %1007 = vmatpush1.bf16.msra.mxu0 %v200
    %1008 = vmatprep.subr.bf16.mxu0 %v205
    %1009 = vmatpush1.bf16.msra.mxu0 %v204
    %1010 = vmatprep.subr.bf16.mxu0 0
    %1011 = vmatpush1.bf16.msra.mxu0 0
    %1012 = vmatprep.subr.bf16.mxu0 0
    %1013 = vmatpush1.bf16.msra.mxu0 0
    %1014 = vmatprep.subr.bf16.mxu0 0
    %1015 = vmatpush1.bf16.msra.mxu0 0
    %1016 = vmatprep.subr.bf16.mxu0 0
    %1017 = vmatpush1.bf16.msra.mxu0 0
    %1018 = vmatprep.subr.bf16.mxu0 0
    %1019 = vmatpush1.bf16.msra.mxu0 0
    %1020 = vmatprep.subr.bf16.mxu0 0
    %1021 = vmatpush1.bf16.msra.mxu0 0
    %1022 = vmatprep.subr.bf16.mxu0 0
    %1023 = vmatpush1.bf16.msra.mxu0 0
    %1024 = vmatprep.subr.bf16.mxu0 0
    %1025 = vmatpush1.bf16.msra.mxu0 0
    %1026 = vmatprep.mubr.bf16.mxu0 0
    %1027 = vmatmul.mubr.bf16.gmra.mrb[0].mxu0 %v952
    %v1028 = vpop.f32.mrb[0].mxu0
    %v1029 = vadd.f32 0.0, %v1028
    %v1030 = vpop.f32.mrb[0].mxu0
    %v1031 = vadd.f32 0.0, %v1030
    %v1032 = vpop.f32.mrb[0].mxu0
    %v1033 = vpop.f32.mrb[0].mxu0
    %1034 = vdwg.mxu0
    %v1039 = vcombine.low %v988, %v990
    %v1040 = vcombine.low %v1029, %v1031
    %v1042 = vunpack.c.l.s4 1966171168
    %v1043 = vunpack.c.0.s8 %v1042
    %v1044 = vlaneseq
    %v1045 = vshrl.u32 %v1044, 7
    %v1046 = vsub.s32 %v1043, %v1045
    %v1047 = vrot.slane %v1039, %v1046
    %v1049 = vunpack.c.l.s4 1966171168
    %v1050 = vunpack.c.0.s8 %v1049
    %v1051 = vlaneseq
    %v1052 = vshrl.u32 %v1051, 7
    %v1053 = vsub.s32 %v1050, %v1052
    %v1054 = vrot.slane %v1040, %v1053
    %v1055 = vcombine.low %v1047, %v1054
    %v1057 = vunpack.c.l.s4 1966171168
    %v1058 = vunpack.c.0.s8 %v1057
    %v1059 = vlaneseq
    %v1060 = vshrl.u32 %v1059, 7
    %v1061 = vsub.s32 %v1058, %v1060
    %v1062 = vrot.slane %v1055, %v1061
    %v1064 = vadd.f32 %v951, %v1062
    %v1065 = vxor.u32 %v1064, 2147483648
    %v1066 = vmul.f32 %v1065, 1.442695
    %v1067 = vpow.pop %v1066
    %v1068 = vadd.f32 %v1067, 1.0
    %v1069 = vrcp.pop %v1068
    %v1070 = vmul.f32 1.0, %v1069
    %v1072 = vrot.slane %v1064, 2
    %v1074 = vtanh.pop %v1072
    %v1075 = vrot.slane %v1064, 3
    %v1077 = vxor.u32 %v1075, 2147483648
    %v1078 = vmul.f32 %v1077, 1.442695
    %v1079 = vpow.pop %v1078
    %v1080 = vadd.f32 %v1079, 1.0
    %v1081 = vrcp.pop %v1080
    %v1082 = vmul.f32 1.0, %v1081
    %v1084 = vrot.slane %v1070, 1
    %v1086 = vmul.f32 %v1084, %v945
    %v1087 = vmul.f32 %v1070, %v1074
    %v1088 = vadd.f32 %v1086, %v1087
    %v1089 = vtanh.pop %v1088
    %v1090 = vmul.f32 %v1082, %v1089
    %s1091 = sld [smem:[#allocation3 + $0x6]]
    %v1092 = vstv %s1091
    %v1093 = vmul.f32 %v1092, %v40
    %v1094 = vadd.f32 %v1093, %v41
    %v1095 = vpack.c.bf16 %v1090, %v1090
    %1096 = vmatprep.subr.bf16.mxu0 %v175
    %1097 = vmatpush1.bf16.msra.mxu0 %v174
    %1098 = vmatprep.subr.bf16.mxu0 %v179
    %1099 = vmatpush1.bf16.msra.mxu0 %v178
    %1100 = vmatprep.subr.bf16.mxu0 %v183
    %1101 = vmatpush1.bf16.msra.mxu0 %v182
    %1102 = vmatprep.subr.bf16.mxu0 %v187
    %1103 = vmatpush1.bf16.msra.mxu0 %v186
    %1104 = vmatprep.subr.bf16.mxu0 %v191
    %1105 = vmatpush1.bf16.msra.mxu0 %v190
    %1106 = vmatprep.subr.bf16.mxu0 %v195
    %1107 = vmatpush1.bf16.msra.mxu0 %v194
    %1108 = vmatprep.subr.bf16.mxu0 %v199
    %1109 = vmatpush1.bf16.msra.mxu0 %v198
    %1110 = vmatprep.subr.bf16.mxu0 %v203
    %1111 = vmatpush1.bf16.msra.mxu0 %v202
    %1112 = vmatprep.subr.bf16.mxu0 0
    %1113 = vmatpush1.bf16.msra.mxu0 0
    %1114 = vmatprep.subr.bf16.mxu0 0
    %1115 = vmatpush1.bf16.msra.mxu0 0
    %1116 = vmatprep.subr.bf16.mxu0 0
    %1117 = vmatpush1.bf16.msra.mxu0 0
    %1118 = vmatprep.subr.bf16.mxu0 0
    %1119 = vmatpush1.bf16.msra.mxu0 0
    %1120 = vmatprep.subr.bf16.mxu0 0
    %1121 = vmatpush1.bf16.msra.mxu0 0
    %1122 = vmatprep.subr.bf16.mxu0 0
    %1123 = vmatpush1.bf16.msra.mxu0 0
    %1124 = vmatprep.subr.bf16.mxu0 0
    %1125 = vmatpush1.bf16.msra.mxu0 0
    %1126 = vmatprep.subr.bf16.mxu0 0
    %1127 = vmatpush1.bf16.msra.mxu0 0
    %1128 = vmatprep.mubr.bf16.mxu0 0
    %1129 = vmatmul.mubr.bf16.gmra.mrb[0].mxu0 %v1095
    %v1130 = vpop.f32.mrb[0].mxu0
    %v1131 = vadd.f32 0.0, %v1130
    %v1132 = vpop.f32.mrb[0].mxu0
    %v1133 = vadd.f32 0.0, %v1132
    %v1134 = vpop.f32.mrb[0].mxu0
    %v1135 = vpop.f32.mrb[0].mxu0
    %1136 = vdwg.mxu0
    %1137 = vmatprep.subr.bf16.mxu0 %v177
    %1138 = vmatpush1.bf16.msra.mxu0 %v176
    %1139 = vmatprep.subr.bf16.mxu0 %v181
    %1140 = vmatpush1.bf16.msra.mxu0 %v180
    %1141 = vmatprep.subr.bf16.mxu0 %v185
    %1142 = vmatpush1.bf16.msra.mxu0 %v184
    %1143 = vmatprep.subr.bf16.mxu0 %v189
    %1144 = vmatpush1.bf16.msra.mxu0 %v188
    %1145 = vmatprep.subr.bf16.mxu0 %v193
    %1146 = vmatpush1.bf16.msra.mxu0 %v192
    %1147 = vmatprep.subr.bf16.mxu0 %v197
    %1148 = vmatpush1.bf16.msra.mxu0 %v196
    %1149 = vmatprep.subr.bf16.mxu0 %v201
    %1150 = vmatpush1.bf16.msra.mxu0 %v200
    %1151 = vmatprep.subr.bf16.mxu0 %v205
    %1152 = vmatpush1.bf16.msra.mxu0 %v204
    %1153 = vmatprep.subr.bf16.mxu0 0
    %1154 = vmatpush1.bf16.msra.mxu0 0
    %1155 = vmatprep.subr.bf16.mxu0 0
    %1156 = vmatpush1.bf16.msra.mxu0 0
    %1157 = vmatprep.subr.bf16.mxu0 0
    %1158 = vmatpush1.bf16.msra.mxu0 0
    %1159 = vmatprep.subr.bf16.mxu0 0
    %1160 = vmatpush1.bf16.msra.mxu0 0
    %1161 = vmatprep.subr.bf16.mxu0 0
    %1162 = vmatpush1.bf16.msra.mxu0 0
    %1163 = vmatprep.subr.bf16.mxu0 0
    %1164 = vmatpush1.bf16.msra.mxu0 0
    %1165 = vmatprep.subr.bf16.mxu0 0
    %1166 = vmatpush1.bf16.msra.mxu0 0
    %1167 = vmatprep.subr.bf16.mxu0 0
    %1168 = vmatpush1.bf16.msra.mxu0 0
    %1169 = vmatprep.mubr.bf16.mxu0 0
    %1170 = vmatmul.mubr.bf16.gmra.mrb[0].mxu0 %v1095
    %v1171 = vpop.f32.mrb[0].mxu0
    %v1172 = vadd.f32 0.0, %v1171
    %v1173 = vpop.f32.mrb[0].mxu0
    %v1174 = vadd.f32 0.0, %v1173
    %v1175 = vpop.f32.mrb[0].mxu0
    %v1176 = vpop.f32.mrb[0].mxu0
    %1177 = vdwg.mxu0
    %v1182 = vcombine.low %v1131, %v1133
    %v1183 = vcombine.low %v1172, %v1174
    %v1185 = vunpack.c.l.s4 1966171168
    %v1186 = vunpack.c.0.s8 %v1185
    %v1187 = vlaneseq
    %v1188 = vshrl.u32 %v1187, 7
    %v1189 = vsub.s32 %v1186, %v1188
    %v1190 = vrot.slane %v1182, %v1189
    %v1192 = vunpack.c.l.s4 1966171168
    %v1193 = vunpack.c.0.s8 %v1192
    %v1194 = vlaneseq
    %v1195 = vshrl.u32 %v1194, 7
    %v1196 = vsub.s32 %v1193, %v1195
    %v1197 = vrot.slane %v1183, %v1196
    %v1198 = vcombine.low %v1190, %v1197
    %v1200 = vunpack.c.l.s4 1966171168
    %v1201 = vunpack.c.0.s8 %v1200
    %v1202 = vlaneseq
    %v1203 = vshrl.u32 %v1202, 7
    %v1204 = vsub.s32 %v1201, %v1203
    %v1205 = vrot.slane %v1198, %v1204
    %v1207 = vadd.f32 %v1094, %v1205
    %v1208 = vxor.u32 %v1207, 2147483648
    %v1209 = vmul.f32 %v1208, 1.442695
    %v1210 = vpow.pop %v1209
    %v1211 = vadd.f32 %v1210, 1.0
    %v1212 = vrcp.pop %v1211
    %v1213 = vmul.f32 1.0, %v1212
    %v1215 = vrot.slane %v1207, 2
    %v1217 = vtanh.pop %v1215
    %v1218 = vrot.slane %v1207, 3
    %v1220 = vxor.u32 %v1218, 2147483648
    %v1221 = vmul.f32 %v1220, 1.442695
    %v1222 = vpow.pop %v1221
    %v1223 = vadd.f32 %v1222, 1.0
    %v1224 = vrcp.pop %v1223
    %v1225 = vmul.f32 1.0, %v1224
    %v1227 = vrot.slane %v1213, 1
    %v1229 = vmul.f32 %v1227, %v1088
    %v1230 = vmul.f32 %v1213, %v1217
    %v1231 = vadd.f32 %v1229, %v1230
    %v1232 = vtanh.pop %v1231
    %v1233 = vmul.f32 %v1225, %v1232
    %s1234 = sld [smem:[#allocation3 + $0x7]]
    %v1235 = vstv %s1234
    %v1236 = vmul.f32 %v1235, %v40
    %v1237 = vadd.f32 %v1236, %v41
    %v1238 = vpack.c.bf16 %v1233, %v1233
    %1239 = vmatprep.subr.bf16.mxu0 %v175
    %1240 = vmatpush1.bf16.msra.mxu0 %v174
    %1241 = vmatprep.subr.bf16.mxu0 %v179
    %1242 = vmatpush1.bf16.msra.mxu0 %v178
    %1243 = vmatprep.subr.bf16.mxu0 %v183
    %1244 = vmatpush1.bf16.msra.mxu0 %v182
    %1245 = vmatprep.subr.bf16.mxu0 %v187
    %1246 = vmatpush1.bf16.msra.mxu0 %v186
    %1247 = vmatprep.subr.bf16.mxu0 %v191
    %1248 = vmatpush1.bf16.msra.mxu0 %v190
    %1249 = vmatprep.subr.bf16.mxu0 %v195
    %1250 = vmatpush1.bf16.msra.mxu0 %v194
    %1251 = vmatprep.subr.bf16.mxu0 %v199
    %1252 = vmatpush1.bf16.msra.mxu0 %v198
    %1253 = vmatprep.subr.bf16.mxu0 %v203
    %1254 = vmatpush1.bf16.msra.mxu0 %v202
    %1255 = vmatprep.subr.bf16.mxu0 0
    %1256 = vmatpush1.bf16.msra.mxu0 0
    %1257 = vmatprep.subr.bf16.mxu0 0
    %1258 = vmatpush1.bf16.msra.mxu0 0
    %1259 = vmatprep.subr.bf16.mxu0 0
    %1260 = vmatpush1.bf16.msra.mxu0 0
    %1261 = vmatprep.subr.bf16.mxu0 0
    %1262 = vmatpush1.bf16.msra.mxu0 0
    %1263 = vmatprep.subr.bf16.mxu0 0
    %1264 = vmatpush1.bf16.msra.mxu0 0
    %1265 = vmatprep.subr.bf16.mxu0 0
    %1266 = vmatpush1.bf16.msra.mxu0 0
    %1267 = vmatprep.subr.bf16.mxu0 0
    %1268 = vmatpush1.bf16.msra.mxu0 0
    %1269 = vmatprep.subr.bf16.mxu0 0
    %1270 = vmatpush1.bf16.msra.mxu0 0
    %1271 = vmatprep.mubr.bf16.mxu0 0
    %1272 = vmatmul.mubr.bf16.gmra.mrb[0].mxu0 %v1238
    %v1273 = vpop.f32.mrb[0].mxu0
    %v1274 = vadd.f32 0.0, %v1273
    %v1275 = vpop.f32.mrb[0].mxu0
    %v1276 = vadd.f32 0.0, %v1275
    %v1277 = vpop.f32.mrb[0].mxu0
    %v1278 = vpop.f32.mrb[0].mxu0
    %1279 = vdwg.mxu0
    %1280 = vmatprep.subr.bf16.mxu0 %v177
    %1281 = vmatpush1.bf16.msra.mxu0 %v176
    %1282 = vmatprep.subr.bf16.mxu0 %v181
    %1283 = vmatpush1.bf16.msra.mxu0 %v180
    %1284 = vmatprep.subr.bf16.mxu0 %v185
    %1285 = vmatpush1.bf16.msra.mxu0 %v184
    %1286 = vmatprep.subr.bf16.mxu0 %v189
    %1287 = vmatpush1.bf16.msra.mxu0 %v188
    %1288 = vmatprep.subr.bf16.mxu0 %v193
    %1289 = vmatpush1.bf16.msra.mxu0 %v192
    %1290 = vmatprep.subr.bf16.mxu0 %v197
    %1291 = vmatpush1.bf16.msra.mxu0 %v196
    %1292 = vmatprep.subr.bf16.mxu0 %v201
    %1293 = vmatpush1.bf16.msra.mxu0 %v200
    %1294 = vmatprep.subr.bf16.mxu0 %v205
    %1295 = vmatpush1.bf16.msra.mxu0 %v204
    %1296 = vmatprep.subr.bf16.mxu0 0
    %1297 = vmatpush1.bf16.msra.mxu0 0
    %1298 = vmatprep.subr.bf16.mxu0 0
    %1299 = vmatpush1.bf16.msra.mxu0 0
    %1300 = vmatprep.subr.bf16.mxu0 0
    %1301 = vmatpush1.bf16.msra.mxu0 0
    %1302 = vmatprep.subr.bf16.mxu0 0
    %1303 = vmatpush1.bf16.msra.mxu0 0
    %1304 = vmatprep.subr.bf16.mxu0 0
    %1305 = vmatpush1.bf16.msra.mxu0 0
    %1306 = vmatprep.subr.bf16.mxu0 0
    %1307 = vmatpush1.bf16.msra.mxu0 0
    %1308 = vmatprep.subr.bf16.mxu0 0
    %1309 = vmatpush1.bf16.msra.mxu0 0
    %1310 = vmatprep.subr.bf16.mxu0 0
    %1311 = vmatpush1.bf16.msra.mxu0 0
    %1312 = vmatprep.mubr.bf16.mxu0 0
    %1313 = vmatmul.mubr.bf16.gmra.mrb[0].mxu0 %v1238
    %v1314 = vpop.f32.mrb[0].mxu0
    %v1315 = vadd.f32 0.0, %v1314
    %v1316 = vpop.f32.mrb[0].mxu0
    %v1317 = vadd.f32 0.0, %v1316
    %v1318 = vpop.f32.mrb[0].mxu0
    %v1319 = vpop.f32.mrb[0].mxu0
    %1320 = vdwg.mxu0
    %v1325 = vcombine.low %v1274, %v1276
    %v1326 = vcombine.low %v1315, %v1317
    %v1328 = vunpack.c.l.s4 1966171168
    %v1329 = vunpack.c.0.s8 %v1328
    %v1330 = vlaneseq
    %v1331 = vshrl.u32 %v1330, 7
    %v1332 = vsub.s32 %v1329, %v1331
    %v1333 = vrot.slane %v1325, %v1332
    %v1335 = vunpack.c.l.s4 1966171168
    %v1336 = vunpack.c.0.s8 %v1335
    %v1337 = vlaneseq
    %v1338 = vshrl.u32 %v1337, 7
    %v1339 = vsub.s32 %v1336, %v1338
    %v1340 = vrot.slane %v1326, %v1339
    %v1341 = vcombine.low %v1333, %v1340
    %v1343 = vunpack.c.l.s4 1966171168
    %v1344 = vunpack.c.0.s8 %v1343
    %v1345 = vlaneseq
    %v1346 = vshrl.u32 %v1345, 7
    %v1347 = vsub.s32 %v1344, %v1346
    %v1348 = vrot.slane %v1341, %v1347
    %v1350 = vadd.f32 %v1237, %v1348
    %v1351 = vxor.u32 %v1350, 2147483648
    %v1352 = vmul.f32 %v1351, 1.442695
    %v1353 = vpow.pop %v1352
    %v1354 = vadd.f32 %v1353, 1.0
    %v1355 = vrcp.pop %v1354
    %v1356 = vmul.f32 1.0, %v1355
    %v1358 = vrot.slane %v1350, 2
    %v1360 = vtanh.pop %v1358
    %v1361 = vrot.slane %v1350, 3
    %v1363 = vxor.u32 %v1361, 2147483648
    %v1364 = vmul.f32 %v1363, 1.442695
    %v1365 = vpow.pop %v1364
    %v1366 = vadd.f32 %v1365, 1.0
    %v1367 = vrcp.pop %v1366
    %v1368 = vmul.f32 1.0, %v1367
    %v1370 = vrot.slane %v1356, 1
    %v1372 = vmul.f32 %v1370, %v1231
    %v1373 = vmul.f32 %v1356, %v1360
    %v1374 = vadd.f32 %v1372, %v1373
    %v1375 = vtanh.pop %v1374
    %v1376 = vmul.f32 %v1368, %v1375
    %v1377 = vld [vmem:[%s4] sm:$0x1]
    %v1378 = vmul.f32 %v1376, %v1377
    %vm1379 = vcmask 1040384
    %v1380 = vsel %vm1379, %v1378, 0.0
    %1381 = vadd.xlane.f32.xlu0 %v1380
    %v1382 = vpop.xlane.xlu0 %1381
    %v1383 = vld [vmem:[#allocation2] sm:$0x1]
    %v1384 = vadd.f32 %v1382, %v1383
    %vm1385 = vcmask 0
    %1386 = vst.msk [vmem:[#allocation6] sm:$0x1] %vm1385, %v1384
    // Predicated region
    $region30: #{lstm_forward.1} parent=1 // pred_check
      _
    $region31: #{lstm_forward.1} parent=1 // pred_check_branch
      %1388 = sbr.rel (0) target = $region33
    $region32: #{lstm_forward.1} parent=1 // pred_region
      %s1390 = ssub.s32 16, 16
      %1391 = vsyncadd [#allocation4], %s1390
      %s1393 = sshll.u32 [#allocation6], 4
      %s1394 = int_to_ptr.vmem [resolvable:$true] %s1393
      %1396 = dma.vmem_to_hbm [thread:$0]  %s1394, 16, %s6, [#allocation4]
    $region33: #{lstm_forward.1} parent=1 // pred_fallthru
      _
    // Predicated region
    $region34: #{lstm_forward.1} parent=1 // pred_check
      _
    $region35: #{lstm_forward.1} parent=1 // pred_check_branch
      %1398 = sbr.rel (0) target = $region37
    $region36: #{lstm_forward.1} parent=1 // pred_region
      %1399 = dma.done [#allocation4], 16
    $region37: #{lstm_forward.1} parent=1 // pred_fallthru
      _
    %1400 = vsyncpa [#allocation4], 1
    %1401 = vsyncpa [#allocation5], 1

</llo_original>
